<compile_context>
chip_gen: v5e
topology: v5e:2x2
jax: 0.10.0
libtpu: 0.0.40
codegen_flags: <defaults>
</compile_context>

<pallas_src>
import math

import jax
import jax.numpy as jnp
from jax.experimental import pallas as pl
from jax.experimental.pallas import tpu as pltpu


def _make_chord_kernel(T, B, H, n_tokens, n_layers):
    """Build the Pallas kernel body (whole problem fits in VMEM at these sizes).

    B here is the sublane-padded batch (multiple of 8).
    """

    def kernel(*refs):
        idx = 0
        x_ref = refs[idx]; idx += 1          # (T*B, F)   bf16, time-major, flat
        h0_ref = refs[idx]; idx += 1         # (L*B, H)   f32
        c0_ref = refs[idx]; idx += 1         # (L*B, H)   f32
        wih0_ref = refs[idx]; idx += 1       # (F, 4H)    bf16
        whh0_ref = refs[idx]; idx += 1       # (H, 4H)    bf16
        b0_ref = refs[idx]; idx += 1         # (1, 4H)    f32, b_ih_0 + b_hh_0
        wih_refs, whh_refs, b_refs = [], [], []
        for _ in range(n_layers - 1):
            wih_refs.append(refs[idx]); idx += 1   # (H, 4H) bf16
            whh_refs.append(refs[idx]); idx += 1   # (H, 4H) bf16
            b_refs.append(refs[idx]); idx += 1     # (1, 4H) f32, b_ih + b_hh
        wdec_ref = refs[idx]; idx += 1       # (H, n_tokens)  f32
        bdec_ref = refs[idx]; idx += 1       # (1, n_tokens)  f32
        out_ref, hc_ref = refs[idx], refs[idx + 1]

        # --- Off the recurrence path: one big bf16 matmul (f32 accumulate) for
        # all layer-0 input projections, bias folded in.  Lane-dense (T*B, 4H).
        # (Dropout on the input == identity in eval mode.)
        xproj = (jnp.dot(x_ref[...], wih0_ref[...],
                         preferred_element_type=jnp.float32) + b0_ref[...])

        # Load weights once (already resident in VMEM).
        whh0 = whh0_ref[...]
        w_ih = [w[...] for w in wih_refs]
        w_hh = [w[...] for w in whh_refs]
        b_ls = [b[...] for b in b_refs]
        w_dec = wdec_ref[...]
        b_dec = bdec_ref[...]

        # Per-layer states as plain Python values (no per-step stacking).
        # f32 states for the cell math / outputs, bf16 shadows for the MXU.
        hs = [h0_ref[l * B:(l + 1) * B, :] for l in range(n_layers)]
        cs = [c0_ref[l * B:(l + 1) * B, :] for l in range(n_layers)]
        hs_bf = [h.astype(jnp.bfloat16) for h in hs]
        acc_h = jnp.zeros((B, H), jnp.float32)

        def lstm_cell(gates, c_prev):
            # Two full-vreg EUP pushes, then static lane slices (PyTorch gate
            # order i, f, g, o).
            s = jax.nn.sigmoid(gates)
            t = jnp.tanh(gates)
            i_g = s[:, 0 * H:1 * H]
            f_g = s[:, 1 * H:2 * H]
            g_g = t[:, 2 * H:3 * H]
            o_g = s[:, 3 * H:4 * H]
            c_new = f_g * c_prev + i_g * g_g
            h_new = o_g * jnp.tanh(c_new)
            return h_new, c_new

        # T is tiny and static -> full unroll with static (sublane-aligned)
        # slices everywhere.
        for t in range(T):
            # Layer 0: only h @ W_hh remains on the serial critical path; the
            # precomputed xproj slice is added onto the matmul result drain.
            gates0 = (jnp.dot(hs_bf[0], whh0,
                              preferred_element_type=jnp.float32)
                      + xproj[t * B:(t + 1) * B, :])
            hs[0], cs[0] = lstm_cell(gates0, cs[0])
            hs_bf[0] = hs[0].astype(jnp.bfloat16)
            inp_bf = hs_bf[0]
            # Layers >= 1: two independent dots -- h@W_hh only depends on the
            # previous step, so it can overlap with earlier work.
            # (Inter-layer dropout == identity in eval mode.)
            for l in range(1, n_layers):
                gates = (jnp.dot(inp_bf, w_ih[l - 1],
                                 preferred_element_type=jnp.float32)
                         + jnp.dot(hs_bf[l], w_hh[l - 1],
                                   preferred_element_type=jnp.float32)
                         + b_ls[l - 1])
                hs[l], cs[l] = lstm_cell(gates, cs[l])
                hs_bf[l] = hs[l].astype(jnp.bfloat16)
                inp_bf = hs_bf[l]
            acc_h = acc_h + hs[n_layers - 1]   # decoder hoisted out of the loop

        # decoded.mean(dim=0):  mean_t(h_t @ W + b) == mean_t(h_t) @ W + b.
        # Single off-hot-path matmul -> keep it f32 for output precision.
        out_ref[...] = (jnp.dot(acc_h * (1.0 / T), w_dec,
                                preferred_element_type=jnp.float32) + b_dec)
        # hT / cT packed into one contiguous slab: rows [0, L*B) = h, rest = c.
        for l in range(n_layers):
            hc_ref[l * B:(l + 1) * B, :] = hs[l]
            hc_ref[(n_layers + l) * B:(n_layers + l + 1) * B, :] = cs[l]

    return kernel


def chord_model_forward(x, hidden, params):
    """Pallas implementation of ChordModel.forward (LSTM variant, eval mode)."""
    h0, c0 = hidden
    T, B, n_features = x.shape
    L, _, H = h0.shape
    n_tokens = params["w_dec"].shape[1]

    # Host-side layout plumbing / one-time parameter folds (no hot-path compute):
    #   * zero-pad batch to a sublane multiple (8) so every in-kernel slice and
    #     writeback is vreg-aligned; padded rows are sliced off on return
    #   * flatten x and the initial states
    #   * pre-sum the two LSTM biases per layer
    #   * cast matmul weights (and x) to bf16 for the MXU; biases stay f32
    B_pad = ((B + 7) // 8) * 8

    def pad_batch(a):
        pad = [(0, 0)] * a.ndim
        pad[1] = (0, B_pad - B)
        return jnp.pad(a, pad)

    xp = pad_batch(x)
    h0p = pad_batch(h0)
    c0p = pad_batch(c0)

    bf16 = jnp.bfloat16
    x2d = xp.reshape(T * B_pad, n_features).astype(bf16)
    h0_2d = h0p.reshape(L * B_pad, H)
    c0_2d = c0p.reshape(L * B_pad, H)
    flat_inputs = [x2d, h0_2d, c0_2d,
                   params["w_ih_0"].astype(bf16), params["w_hh_0"].astype(bf16),
                   params["b_ih_0"] + params["b_hh_0"]]
    for l in range(1, L):
        flat_inputs += [params[f"w_ih_{l}"].astype(bf16),
                        params[f"w_hh_{l}"].astype(bf16),
                        params[f"b_ih_{l}"] + params[f"b_hh_{l}"]]
    flat_inputs += [params["w_dec"], params["b_dec"]]

    vmem = pl.BlockSpec(memory_space=pltpu.MemorySpace.VMEM)
    out, hc = pl.pallas_call(
        _make_chord_kernel(T, B_pad, H, n_tokens, L),
        out_shape=(
            jax.ShapeDtypeStruct((B_pad, n_tokens), jnp.float32),
            jax.ShapeDtypeStruct((2 * L * B_pad, H), jnp.float32),
        ),
        in_specs=[vmem] * len(flat_inputs),
        out_specs=(vmem, vmem),
    )(*flat_inputs)
    hc = hc.reshape(2, L, B_pad, H)
    return out[:B], (hc[0, :, :B, :], hc[1, :, :B, :])


def init_params(key, n_features, n_hidden, n_tokens, n_layers):
    """Deterministic synthetic init mirroring ChordModel.__init__/init_weights."""
    params = {}
    k = 1.0 / math.sqrt(n_hidden)            # PyTorch default LSTM init range
    keys = jax.random.split(key, 4 * n_layers + 1)
    for l in range(n_layers):
        in_dim = n_features if l == 0 else n_hidden
        k0, k1, k2, k3 = jax.random.split(keys[l], 4)
        params[f"w_ih_{l}"] = jax.random.uniform(
            k0, (in_dim, 4 * n_hidden), jnp.float32, -k, k)
        params[f"w_hh_{l}"] = jax.random.uniform(
            k1, (n_hidden, 4 * n_hidden), jnp.float32, -k, k)
        params[f"b_ih_{l}"] = jax.random.uniform(
            k2, (1, 4 * n_hidden), jnp.float32, -k, k)
        params[f"b_hh_{l}"] = jax.random.uniform(
            k3, (1, 4 * n_hidden), jnp.float32, -k, k)
    # decoder: weight ~ U(-0.1, 0.1), bias = 0 (ChordModel.init_weights)
    params["w_dec"] = jax.random.uniform(
        keys[-1], (n_hidden, n_tokens), jnp.float32, -0.1, 0.1)
    params["b_dec"] = jnp.zeros((1, n_tokens), jnp.float32)
    return params


def reference_forward(x, hidden, params, bf16_matmul=False):
    """Pure-JAX reference (same math, no Pallas) for correctness checks.

    With bf16_matmul=True the recurrence matmuls mirror the kernel's precision
    (bf16 operands, f32 accumulation); the decoder matmul stays f32 either way,
    matching the kernel.
    """
    h0, c0 = hidden
    T, _, _ = x.shape
    L, _, H = h0.shape

    def mm(a, b):
        if bf16_matmul:
            a = a.astype(jnp.bfloat16)
            b = b.astype(jnp.bfloat16)
        return jnp.dot(a, b, preferred_element_type=jnp.float32)

    hs = [h0[l] for l in range(L)]
    cs = [c0[l] for l in range(L)]
    outs = []
    for t in range(T):
        inp = x[t]
        for l in range(L):
            gates = (mm(inp, params[f"w_ih_{l}"]) + mm(hs[l], params[f"w_hh_{l}"])
                     + params[f"b_ih_{l}"] + params[f"b_hh_{l}"])
            i_g = jax.nn.sigmoid(gates[:, :H])
            f_g = jax.nn.sigmoid(gates[:, H:2 * H])
            g_g = jnp.tanh(gates[:, 2 * H:3 * H])
            o_g = jax.nn.sigmoid(gates[:, 3 * H:])
            cs[l] = f_g * cs[l] + i_g * g_g
            hs[l] = o_g * jnp.tanh(cs[l])
            inp = hs[l]
        outs.append(jnp.dot(inp, params["w_dec"],
                            preferred_element_type=jnp.float32)
                    + params["b_dec"])
    dec = jnp.stack(outs, 0)
    return dec.mean(0), (jnp.stack(hs, 0), jnp.stack(cs, 0))


if __name__ == "__main__":
    # Small shapes consistent with the module: seq=8, batch=2, features=32,
    # hidden=32, tokens=16, layers=2 (rnn_type='LSTM').
    T, B = 8, 2
    n_features, n_hidden, n_tokens, n_layers = 32, 32, 16, 2

    key = jax.random.PRNGKey(0)
    k_x, k_p = jax.random.split(key)
    x = jax.random.normal(k_x, (T, B, n_features), jnp.float32)
    params = init_params(k_p, n_features, n_hidden, n_tokens, n_layers)
    # init_hidden(batch_size) for LSTM -> zeros
    h0 = jnp.zeros((n_layers, B, n_hidden), jnp.float32)
    c0 = jnp.zeros((n_layers, B, n_hidden), jnp.float32)

    out, (hT, cT) = chord_model_forward(x, (h0, c0), params)
    out = jax.block_until_ready(out)
    hT = jax.block_until_ready(hT)
    cT = jax.block_until_ready(cT)

    assert out.shape == (B, n_tokens)
    assert hT.shape == (n_layers, B, n_hidden) and cT.shape == (n_layers, B, n_hidden)

    # Tight check against a reference that mirrors the kernel's matmul
    # precision (bf16 operands, f32 accumulation).
    ref_out, (ref_hT, ref_cT) = reference_forward(x, (h0, c0), params,
                                                  bf16_matmul=True)
    assert jnp.allclose(out, ref_out, atol=1e-3, rtol=1e-3)
    assert jnp.allclose(hT, ref_hT, atol=1e-3, rtol=1e-3)
    assert jnp.allclose(cT, ref_cT, atol=1e-3, rtol=1e-3)

    # Looser sanity check against full-f32 math (bf16 operand rounding only).
    ref_out32, (ref_hT32, ref_cT32) = reference_forward(x, (h0, c0), params,
                                                        bf16_matmul=False)
    assert jnp.allclose(out, ref_out32, atol=5e-2, rtol=5e-2)
    assert jnp.allclose(hT, ref_hT32, atol=5e-2, rtol=5e-2)
    assert jnp.allclose(cT, ref_cT32, atol=5e-2, rtol=5e-2)

    print("KERNEL_OK")
</pallas_src>

<mosaic_0001>
module attributes {stable_mosaic.version = 11 : i64} {
  func.func @kernel(%arg0: memref<64x32xbf16, #tpu.memory_space<vmem>>, %arg1: memref<16x32xf32, #tpu.memory_space<vmem>>, %arg2: memref<16x32xf32, #tpu.memory_space<vmem>>, %arg3: memref<32x128xbf16, #tpu.memory_space<vmem>>, %arg4: memref<32x128xbf16, #tpu.memory_space<vmem>>, %arg5: memref<1x128xf32, #tpu.memory_space<vmem>>, %arg6: memref<32x128xbf16, #tpu.memory_space<vmem>>, %arg7: memref<32x128xbf16, #tpu.memory_space<vmem>>, %arg8: memref<1x128xf32, #tpu.memory_space<vmem>>, %arg9: memref<32x16xf32, #tpu.memory_space<vmem>>, %arg10: memref<1x16xf32, #tpu.memory_space<vmem>>, %arg11: memref<8x16xf32, #tpu.memory_space<vmem>>, %arg12: memref<32x32xf32, #tpu.memory_space<vmem>>) attributes {dimension_semantics = [], scalar_prefetch = 0 : i64, scratch_operands = 0 : i64, tpu.core_type = #tpu.core_type<tc>} {
    %c0 = arith.constant 0 : index
    %c0_0 = arith.constant 0 : index
    %0 = vector.load %arg0[%c0, %c0_0] : memref<64x32xbf16, #tpu.memory_space<vmem>>, vector<64x32xbf16>
    %c0_1 = arith.constant 0 : index
    %c0_2 = arith.constant 0 : index
    %1 = vector.load %arg3[%c0_1, %c0_2] : memref<32x128xbf16, #tpu.memory_space<vmem>>, vector<32x128xbf16>
    %cst = arith.constant dense<0.000000e+00> : vector<64x128xf32>
    %2 = tpu.matmul %0, %1, %cst {dimension_numbers = #tpu.dot_dimension_numbers<[1], [0], [0], [1], [0, 0, 1, 1], [], []>} : vector<64x32xbf16>, vector<32x128xbf16>, vector<64x128xf32> -> vector<64x128xf32>
    %c0_3 = arith.constant 0 : index
    %c0_4 = arith.constant 0 : index
    %3 = vector.load %arg5[%c0_3, %c0_4] : memref<1x128xf32, #tpu.memory_space<vmem>>, vector<1x128xf32>
    %4 = vector.broadcast %3 : vector<1x128xf32> to vector<64x128xf32>
    %5 = arith.addf %2, %4 : vector<64x128xf32>
    %c0_5 = arith.constant 0 : index
    %c0_6 = arith.constant 0 : index
    %6 = vector.load %arg4[%c0_5, %c0_6] : memref<32x128xbf16, #tpu.memory_space<vmem>>, vector<32x128xbf16>
    %c0_7 = arith.constant 0 : index
    %c0_8 = arith.constant 0 : index
    %7 = vector.load %arg6[%c0_7, %c0_8] : memref<32x128xbf16, #tpu.memory_space<vmem>>, vector<32x128xbf16>
    %c0_9 = arith.constant 0 : index
    %c0_10 = arith.constant 0 : index
    %8 = vector.load %arg7[%c0_9, %c0_10] : memref<32x128xbf16, #tpu.memory_space<vmem>>, vector<32x128xbf16>
    %c0_11 = arith.constant 0 : index
    %c0_12 = arith.constant 0 : index
    %9 = vector.load %arg8[%c0_11, %c0_12] : memref<1x128xf32, #tpu.memory_space<vmem>>, vector<1x128xf32>
    %c0_13 = arith.constant 0 : index
    %c0_14 = arith.constant 0 : index
    %10 = vector.load %arg9[%c0_13, %c0_14] : memref<32x16xf32, #tpu.memory_space<vmem>>, vector<32x16xf32>
    %c0_15 = arith.constant 0 : index
    %c0_16 = arith.constant 0 : index
    %11 = vector.load %arg10[%c0_15, %c0_16] : memref<1x16xf32, #tpu.memory_space<vmem>>, vector<1x16xf32>
    %c0_17 = arith.constant 0 : index
    %c0_18 = arith.constant 0 : index
    %12 = vector.load %arg1[%c0_17, %c0_18] : memref<16x32xf32, #tpu.memory_space<vmem>>, vector<8x32xf32>
    %c8 = arith.constant 8 : index
    %c0_19 = arith.constant 0 : index
    %13 = vector.load %arg1[%c8, %c0_19] : memref<16x32xf32, #tpu.memory_space<vmem>>, vector<8x32xf32>
    %c0_20 = arith.constant 0 : index
    %c0_21 = arith.constant 0 : index
    %14 = vector.load %arg2[%c0_20, %c0_21] : memref<16x32xf32, #tpu.memory_space<vmem>>, vector<8x32xf32>
    %c8_22 = arith.constant 8 : index
    %c0_23 = arith.constant 0 : index
    %15 = vector.load %arg2[%c8_22, %c0_23] : memref<16x32xf32, #tpu.memory_space<vmem>>, vector<8x32xf32>
    %16 = arith.truncf %12 : vector<8x32xf32> to vector<8x32xbf16>
    %17 = arith.truncf %13 : vector<8x32xf32> to vector<8x32xbf16>
    %cst_24 = arith.constant 0.000000e+00 : f32
    %18 = vector.broadcast %cst_24 : f32 to vector<8x32xf32>
    %cst_25 = arith.constant dense<0.000000e+00> : vector<8x128xf32>
    %19 = tpu.matmul %16, %6, %cst_25 {dimension_numbers = #tpu.dot_dimension_numbers<[1], [0], [0], [1], [0, 0, 1, 1], [], []>} : vector<8x32xbf16>, vector<32x128xbf16>, vector<8x128xf32> -> vector<8x128xf32>
    %20 = vector.extract_strided_slice %5 {offsets = [0, 0], sizes = [8, 128], strides = [1, 1]} : vector<64x128xf32> to vector<8x128xf32>
    %21 = arith.addf %19, %20 : vector<8x128xf32>
    %22 = arith.negf %21 : vector<8x128xf32>
    %23 = math.exp %22 : vector<8x128xf32>
    %cst_26 = arith.constant 1.000000e+00 : f32
    %24 = vector.broadcast %cst_26 : f32 to vector<8x128xf32>
    %25 = arith.addf %24, %23 : vector<8x128xf32>
    %26 = arith.divf %24, %25 : vector<8x128xf32>
    %27 = math.tanh %21 : vector<8x128xf32>
    %28 = vector.extract_strided_slice %26 {offsets = [0, 0], sizes = [8, 32], strides = [1, 1]} : vector<8x128xf32> to vector<8x32xf32>
    %29 = vector.extract_strided_slice %26 {offsets = [0, 32], sizes = [8, 32], strides = [1, 1]} : vector<8x128xf32> to vector<8x32xf32>
    %30 = vector.extract_strided_slice %27 {offsets = [0, 64], sizes = [8, 32], strides = [1, 1]} : vector<8x128xf32> to vector<8x32xf32>
    %31 = vector.extract_strided_slice %26 {offsets = [0, 96], sizes = [8, 32], strides = [1, 1]} : vector<8x128xf32> to vector<8x32xf32>
    %32 = arith.mulf %29, %14 : vector<8x32xf32>
    %33 = arith.mulf %28, %30 : vector<8x32xf32>
    %34 = arith.addf %32, %33 : vector<8x32xf32>
    %35 = math.tanh %34 : vector<8x32xf32>
    %36 = arith.mulf %31, %35 : vector<8x32xf32>
    %37 = arith.truncf %36 : vector<8x32xf32> to vector<8x32xbf16>
    %cst_27 = arith.constant dense<0.000000e+00> : vector<8x128xf32>
    %38 = tpu.matmul %37, %7, %cst_27 {dimension_numbers = #tpu.dot_dimension_numbers<[1], [0], [0], [1], [0, 0, 1, 1], [], []>} : vector<8x32xbf16>, vector<32x128xbf16>, vector<8x128xf32> -> vector<8x128xf32>
    %cst_28 = arith.constant dense<0.000000e+00> : vector<8x128xf32>
    %39 = tpu.matmul %17, %8, %cst_28 {dimension_numbers = #tpu.dot_dimension_numbers<[1], [0], [0], [1], [0, 0, 1, 1], [], []>} : vector<8x32xbf16>, vector<32x128xbf16>, vector<8x128xf32> -> vector<8x128xf32>
    %40 = arith.addf %38, %39 : vector<8x128xf32>
    %41 = vector.broadcast %9 : vector<1x128xf32> to vector<8x128xf32>
    %42 = arith.addf %40, %41 : vector<8x128xf32>
    %43 = arith.negf %42 : vector<8x128xf32>
    %44 = math.exp %43 : vector<8x128xf32>
    %cst_29 = arith.constant 1.000000e+00 : f32
    %45 = vector.broadcast %cst_29 : f32 to vector<8x128xf32>
    %46 = arith.addf %45, %44 : vector<8x128xf32>
    %47 = arith.divf %45, %46 : vector<8x128xf32>
    %48 = math.tanh %42 : vector<8x128xf32>
    %49 = vector.extract_strided_slice %47 {offsets = [0, 0], sizes = [8, 32], strides = [1, 1]} : vector<8x128xf32> to vector<8x32xf32>
    %50 = vector.extract_strided_slice %47 {offsets = [0, 32], sizes = [8, 32], strides = [1, 1]} : vector<8x128xf32> to vector<8x32xf32>
    %51 = vector.extract_strided_slice %48 {offsets = [0, 64], sizes = [8, 32], strides = [1, 1]} : vector<8x128xf32> to vector<8x32xf32>
    %52 = vector.extract_strided_slice %47 {offsets = [0, 96], sizes = [8, 32], strides = [1, 1]} : vector<8x128xf32> to vector<8x32xf32>
    %53 = arith.mulf %50, %15 : vector<8x32xf32>
    %54 = arith.mulf %49, %51 : vector<8x32xf32>
    %55 = arith.addf %53, %54 : vector<8x32xf32>
    %56 = math.tanh %55 : vector<8x32xf32>
    %57 = arith.mulf %52, %56 : vector<8x32xf32>
    %58 = arith.truncf %57 : vector<8x32xf32> to vector<8x32xbf16>
    %59 = arith.addf %18, %57 : vector<8x32xf32>
    %cst_30 = arith.constant dense<0.000000e+00> : vector<8x128xf32>
    %60 = tpu.matmul %37, %6, %cst_30 {dimension_numbers = #tpu.dot_dimension_numbers<[1], [0], [0], [1], [0, 0, 1, 1], [], []>} : vector<8x32xbf16>, vector<32x128xbf16>, vector<8x128xf32> -> vector<8x128xf32>
    %61 = vector.extract_strided_slice %5 {offsets = [8, 0], sizes = [8, 128], strides = [1, 1]} : vector<64x128xf32> to vector<8x128xf32>
    %62 = arith.addf %60, %61 : vector<8x128xf32>
    %63 = arith.negf %62 : vector<8x128xf32>
    %64 = math.exp %63 : vector<8x128xf32>
    %cst_31 = arith.constant 1.000000e+00 : f32
    %65 = vector.broadcast %cst_31 : f32 to vector<8x128xf32>
    %66 = arith.addf %65, %64 : vector<8x128xf32>
    %67 = arith.divf %65, %66 : vector<8x128xf32>
    %68 = math.tanh %62 : vector<8x128xf32>
    %69 = vector.extract_strided_slice %67 {offsets = [0, 0], sizes = [8, 32], strides = [1, 1]} : vector<8x128xf32> to vector<8x32xf32>
    %70 = vector.extract_strided_slice %67 {offsets = [0, 32], sizes = [8, 32], strides = [1, 1]} : vector<8x128xf32> to vector<8x32xf32>
    %71 = vector.extract_strided_slice %68 {offsets = [0, 64], sizes = [8, 32], strides = [1, 1]} : vector<8x128xf32> to vector<8x32xf32>
    %72 = vector.extract_strided_slice %67 {offsets = [0, 96], sizes = [8, 32], strides = [1, 1]} : vector<8x128xf32> to vector<8x32xf32>
    %73 = arith.mulf %70, %34 : vector<8x32xf32>
    %74 = arith.mulf %69, %71 : vector<8x32xf32>
    %75 = arith.addf %73, %74 : vector<8x32xf32>
    %76 = math.tanh %75 : vector<8x32xf32>
    %77 = arith.mulf %72, %76 : vector<8x32xf32>
    %78 = arith.truncf %77 : vector<8x32xf32> to vector<8x32xbf16>
    %cst_32 = arith.constant dense<0.000000e+00> : vector<8x128xf32>
    %79 = tpu.matmul %78, %7, %cst_32 {dimension_numbers = #tpu.dot_dimension_numbers<[1], [0], [0], [1], [0, 0, 1, 1], [], []>} : vector<8x32xbf16>, vector<32x128xbf16>, vector<8x128xf32> -> vector<8x128xf32>
    %cst_33 = arith.constant dense<0.000000e+00> : vector<8x128xf32>
    %80 = tpu.matmul %58, %8, %cst_33 {dimension_numbers = #tpu.dot_dimension_numbers<[1], [0], [0], [1], [0, 0, 1, 1], [], []>} : vector<8x32xbf16>, vector<32x128xbf16>, vector<8x128xf32> -> vector<8x128xf32>
    %81 = arith.addf %79, %80 : vector<8x128xf32>
    %82 = vector.broadcast %9 : vector<1x128xf32> to vector<8x128xf32>
    %83 = arith.addf %81, %82 : vector<8x128xf32>
    %84 = arith.negf %83 : vector<8x128xf32>
    %85 = math.exp %84 : vector<8x128xf32>
    %cst_34 = arith.constant 1.000000e+00 : f32
    %86 = vector.broadcast %cst_34 : f32 to vector<8x128xf32>
    %87 = arith.addf %86, %85 : vector<8x128xf32>
    %88 = arith.divf %86, %87 : vector<8x128xf32>
    %89 = math.tanh %83 : vector<8x128xf32>
    %90 = vector.extract_strided_slice %88 {offsets = [0, 0], sizes = [8, 32], strides = [1, 1]} : vector<8x128xf32> to vector<8x32xf32>
    %91 = vector.extract_strided_slice %88 {offsets = [0, 32], sizes = [8, 32], strides = [1, 1]} : vector<8x128xf32> to vector<8x32xf32>
    %92 = vector.extract_strided_slice %89 {offsets = [0, 64], sizes = [8, 32], strides = [1, 1]} : vector<8x128xf32> to vector<8x32xf32>
    %93 = vector.extract_strided_slice %88 {offsets = [0, 96], sizes = [8, 32], strides = [1, 1]} : vector<8x128xf32> to vector<8x32xf32>
    %94 = arith.mulf %91, %55 : vector<8x32xf32>
    %95 = arith.mulf %90, %92 : vector<8x32xf32>
    %96 = arith.addf %94, %95 : vector<8x32xf32>
    %97 = math.tanh %96 : vector<8x32xf32>
    %98 = arith.mulf %93, %97 : vector<8x32xf32>
    %99 = arith.truncf %98 : vector<8x32xf32> to vector<8x32xbf16>
    %100 = arith.addf %59, %98 : vector<8x32xf32>
    %cst_35 = arith.constant dense<0.000000e+00> : vector<8x128xf32>
    %101 = tpu.matmul %78, %6, %cst_35 {dimension_numbers = #tpu.dot_dimension_numbers<[1], [0], [0], [1], [0, 0, 1, 1], [], []>} : vector<8x32xbf16>, vector<32x128xbf16>, vector<8x128xf32> -> vector<8x128xf32>
    %102 = vector.extract_strided_slice %5 {offsets = [16, 0], sizes = [8, 128], strides = [1, 1]} : vector<64x128xf32> to vector<8x128xf32>
    %103 = arith.addf %101, %102 : vector<8x128xf32>
    %104 = arith.negf %103 : vector<8x128xf32>
    %105 = math.exp %104 : vector<8x128xf32>
    %cst_36 = arith.constant 1.000000e+00 : f32
    %106 = vector.broadcast %cst_36 : f32 to vector<8x128xf32>
    %107 = arith.addf %106, %105 : vector<8x128xf32>
    %108 = arith.divf %106, %107 : vector<8x128xf32>
    %109 = math.tanh %103 : vector<8x128xf32>
    %110 = vector.extract_strided_slice %108 {offsets = [0, 0], sizes = [8, 32], strides = [1, 1]} : vector<8x128xf32> to vector<8x32xf32>
    %111 = vector.extract_strided_slice %108 {offsets = [0, 32], sizes = [8, 32], strides = [1, 1]} : vector<8x128xf32> to vector<8x32xf32>
    %112 = vector.extract_strided_slice %109 {offsets = [0, 64], sizes = [8, 32], strides = [1, 1]} : vector<8x128xf32> to vector<8x32xf32>
    %113 = vector.extract_strided_slice %108 {offsets = [0, 96], sizes = [8, 32], strides = [1, 1]} : vector<8x128xf32> to vector<8x32xf32>
    %114 = arith.mulf %111, %75 : vector<8x32xf32>
    %115 = arith.mulf %110, %112 : vector<8x32xf32>
    %116 = arith.addf %114, %115 : vector<8x32xf32>
    %117 = math.tanh %116 : vector<8x32xf32>
    %118 = arith.mulf %113, %117 : vector<8x32xf32>
    %119 = arith.truncf %118 : vector<8x32xf32> to vector<8x32xbf16>
    %cst_37 = arith.constant dense<0.000000e+00> : vector<8x128xf32>
    %120 = tpu.matmul %119, %7, %cst_37 {dimension_numbers = #tpu.dot_dimension_numbers<[1], [0], [0], [1], [0, 0, 1, 1], [], []>} : vector<8x32xbf16>, vector<32x128xbf16>, vector<8x128xf32> -> vector<8x128xf32>
    %cst_38 = arith.constant dense<0.000000e+00> : vector<8x128xf32>
    %121 = tpu.matmul %99, %8, %cst_38 {dimension_numbers = #tpu.dot_dimension_numbers<[1], [0], [0], [1], [0, 0, 1, 1], [], []>} : vector<8x32xbf16>, vector<32x128xbf16>, vector<8x128xf32> -> vector<8x128xf32>
    %122 = arith.addf %120, %121 : vector<8x128xf32>
    %123 = vector.broadcast %9 : vector<1x128xf32> to vector<8x128xf32>
    %124 = arith.addf %122, %123 : vector<8x128xf32>
    %125 = arith.negf %124 : vector<8x128xf32>
    %126 = math.exp %125 : vector<8x128xf32>
    %cst_39 = arith.constant 1.000000e+00 : f32
    %127 = vector.broadcast %cst_39 : f32 to vector<8x128xf32>
    %128 = arith.addf %127, %126 : vector<8x128xf32>
    %129 = arith.divf %127, %128 : vector<8x128xf32>
    %130 = math.tanh %124 : vector<8x128xf32>
    %131 = vector.extract_strided_slice %129 {offsets = [0, 0], sizes = [8, 32], strides = [1, 1]} : vector<8x128xf32> to vector<8x32xf32>
    %132 = vector.extract_strided_slice %129 {offsets = [0, 32], sizes = [8, 32], strides = [1, 1]} : vector<8x128xf32> to vector<8x32xf32>
    %133 = vector.extract_strided_slice %130 {offsets = [0, 64], sizes = [8, 32], strides = [1, 1]} : vector<8x128xf32> to vector<8x32xf32>
    %134 = vector.extract_strided_slice %129 {offsets = [0, 96], sizes = [8, 32], strides = [1, 1]} : vector<8x128xf32> to vector<8x32xf32>
    %135 = arith.mulf %132, %96 : vector<8x32xf32>
    %136 = arith.mulf %131, %133 : vector<8x32xf32>
    %137 = arith.addf %135, %136 : vector<8x32xf32>
    %138 = math.tanh %137 : vector<8x32xf32>
    %139 = arith.mulf %134, %138 : vector<8x32xf32>
    %140 = arith.truncf %139 : vector<8x32xf32> to vector<8x32xbf16>
    %141 = arith.addf %100, %139 : vector<8x32xf32>
    %cst_40 = arith.constant dense<0.000000e+00> : vector<8x128xf32>
    %142 = tpu.matmul %119, %6, %cst_40 {dimension_numbers = #tpu.dot_dimension_numbers<[1], [0], [0], [1], [0, 0, 1, 1], [], []>} : vector<8x32xbf16>, vector<32x128xbf16>, vector<8x128xf32> -> vector<8x128xf32>
    %143 = vector.extract_strided_slice %5 {offsets = [24, 0], sizes = [8, 128], strides = [1, 1]} : vector<64x128xf32> to vector<8x128xf32>
    %144 = arith.addf %142, %143 : vector<8x128xf32>
    %145 = arith.negf %144 : vector<8x128xf32>
    %146 = math.exp %145 : vector<8x128xf32>
    %cst_41 = arith.constant 1.000000e+00 : f32
    %147 = vector.broadcast %cst_41 : f32 to vector<8x128xf32>
    %148 = arith.addf %147, %146 : vector<8x128xf32>
    %149 = arith.divf %147, %148 : vector<8x128xf32>
    %150 = math.tanh %144 : vector<8x128xf32>
    %151 = vector.extract_strided_slice %149 {offsets = [0, 0], sizes = [8, 32], strides = [1, 1]} : vector<8x128xf32> to vector<8x32xf32>
    %152 = vector.extract_strided_slice %149 {offsets = [0, 32], sizes = [8, 32], strides = [1, 1]} : vector<8x128xf32> to vector<8x32xf32>
    %153 = vector.extract_strided_slice %150 {offsets = [0, 64], sizes = [8, 32], strides = [1, 1]} : vector<8x128xf32> to vector<8x32xf32>
    %154 = vector.extract_strided_slice %149 {offsets = [0, 96], sizes = [8, 32], strides = [1, 1]} : vector<8x128xf32> to vector<8x32xf32>
    %155 = arith.mulf %152, %116 : vector<8x32xf32>
    %156 = arith.mulf %151, %153 : vector<8x32xf32>
    %157 = arith.addf %155, %156 : vector<8x32xf32>
    %158 = math.tanh %157 : vector<8x32xf32>
    %159 = arith.mulf %154, %158 : vector<8x32xf32>
    %160 = arith.truncf %159 : vector<8x32xf32> to vector<8x32xbf16>
    %cst_42 = arith.constant dense<0.000000e+00> : vector<8x128xf32>
    %161 = tpu.matmul %160, %7, %cst_42 {dimension_numbers = #tpu.dot_dimension_numbers<[1], [0], [0], [1], [0, 0, 1, 1], [], []>} : vector<8x32xbf16>, vector<32x128xbf16>, vector<8x128xf32> -> vector<8x128xf32>
    %cst_43 = arith.constant dense<0.000000e+00> : vector<8x128xf32>
    %162 = tpu.matmul %140, %8, %cst_43 {dimension_numbers = #tpu.dot_dimension_numbers<[1], [0], [0], [1], [0, 0, 1, 1], [], []>} : vector<8x32xbf16>, vector<32x128xbf16>, vector<8x128xf32> -> vector<8x128xf32>
    %163 = arith.addf %161, %162 : vector<8x128xf32>
    %164 = vector.broadcast %9 : vector<1x128xf32> to vector<8x128xf32>
    %165 = arith.addf %163, %164 : vector<8x128xf32>
    %166 = arith.negf %165 : vector<8x128xf32>
    %167 = math.exp %166 : vector<8x128xf32>
    %cst_44 = arith.constant 1.000000e+00 : f32
    %168 = vector.broadcast %cst_44 : f32 to vector<8x128xf32>
    %169 = arith.addf %168, %167 : vector<8x128xf32>
    %170 = arith.divf %168, %169 : vector<8x128xf32>
    %171 = math.tanh %165 : vector<8x128xf32>
    %172 = vector.extract_strided_slice %170 {offsets = [0, 0], sizes = [8, 32], strides = [1, 1]} : vector<8x128xf32> to vector<8x32xf32>
    %173 = vector.extract_strided_slice %170 {offsets = [0, 32], sizes = [8, 32], strides = [1, 1]} : vector<8x128xf32> to vector<8x32xf32>
    %174 = vector.extract_strided_slice %171 {offsets = [0, 64], sizes = [8, 32], strides = [1, 1]} : vector<8x128xf32> to vector<8x32xf32>
    %175 = vector.extract_strided_slice %170 {offsets = [0, 96], sizes = [8, 32], strides = [1, 1]} : vector<8x128xf32> to vector<8x32xf32>
    %176 = arith.mulf %173, %137 : vector<8x32xf32>
    %177 = arith.mulf %172, %174 : vector<8x32xf32>
    %178 = arith.addf %176, %177 : vector<8x32xf32>
    %179 = math.tanh %178 : vector<8x32xf32>
    %180 = arith.mulf %175, %179 : vector<8x32xf32>
    %181 = arith.truncf %180 : vector<8x32xf32> to vector<8x32xbf16>
    %182 = arith.addf %141, %180 : vector<8x32xf32>
    %cst_45 = arith.constant dense<0.000000e+00> : vector<8x128xf32>
    %183 = tpu.matmul %160, %6, %cst_45 {dimension_numbers = #tpu.dot_dimension_numbers<[1], [0], [0], [1], [0, 0, 1, 1], [], []>} : vector<8x32xbf16>, vector<32x128xbf16>, vector<8x128xf32> -> vector<8x128xf32>
    %184 = vector.extract_strided_slice %5 {offsets = [32, 0], sizes = [8, 128], strides = [1, 1]} : vector<64x128xf32> to vector<8x128xf32>
    %185 = arith.addf %183, %184 : vector<8x128xf32>
    %186 = arith.negf %185 : vector<8x128xf32>
    %187 = math.exp %186 : vector<8x128xf32>
    %cst_46 = arith.constant 1.000000e+00 : f32
    %188 = vector.broadcast %cst_46 : f32 to vector<8x128xf32>
    %189 = arith.addf %188, %187 : vector<8x128xf32>
    %190 = arith.divf %188, %189 : vector<8x128xf32>
    %191 = math.tanh %185 : vector<8x128xf32>
    %192 = vector.extract_strided_slice %190 {offsets = [0, 0], sizes = [8, 32], strides = [1, 1]} : vector<8x128xf32> to vector<8x32xf32>
    %193 = vector.extract_strided_slice %190 {offsets = [0, 32], sizes = [8, 32], strides = [1, 1]} : vector<8x128xf32> to vector<8x32xf32>
    %194 = vector.extract_strided_slice %191 {offsets = [0, 64], sizes = [8, 32], strides = [1, 1]} : vector<8x128xf32> to vector<8x32xf32>
    %195 = vector.extract_strided_slice %190 {offsets = [0, 96], sizes = [8, 32], strides = [1, 1]} : vector<8x128xf32> to vector<8x32xf32>
    %196 = arith.mulf %193, %157 : vector<8x32xf32>
    %197 = arith.mulf %192, %194 : vector<8x32xf32>
    %198 = arith.addf %196, %197 : vector<8x32xf32>
    %199 = math.tanh %198 : vector<8x32xf32>
    %200 = arith.mulf %195, %199 : vector<8x32xf32>
    %201 = arith.truncf %200 : vector<8x32xf32> to vector<8x32xbf16>
    %cst_47 = arith.constant dense<0.000000e+00> : vector<8x128xf32>
    %202 = tpu.matmul %201, %7, %cst_47 {dimension_numbers = #tpu.dot_dimension_numbers<[1], [0], [0], [1], [0, 0, 1, 1], [], []>} : vector<8x32xbf16>, vector<32x128xbf16>, vector<8x128xf32> -> vector<8x128xf32>
    %cst_48 = arith.constant dense<0.000000e+00> : vector<8x128xf32>
    %203 = tpu.matmul %181, %8, %cst_48 {dimension_numbers = #tpu.dot_dimension_numbers<[1], [0], [0], [1], [0, 0, 1, 1], [], []>} : vector<8x32xbf16>, vector<32x128xbf16>, vector<8x128xf32> -> vector<8x128xf32>
    %204 = arith.addf %202, %203 : vector<8x128xf32>
    %205 = vector.broadcast %9 : vector<1x128xf32> to vector<8x128xf32>
    %206 = arith.addf %204, %205 : vector<8x128xf32>
    %207 = arith.negf %206 : vector<8x128xf32>
    %208 = math.exp %207 : vector<8x128xf32>
    %cst_49 = arith.constant 1.000000e+00 : f32
    %209 = vector.broadcast %cst_49 : f32 to vector<8x128xf32>
    %210 = arith.addf %209, %208 : vector<8x128xf32>
    %211 = arith.divf %209, %210 : vector<8x128xf32>
    %212 = math.tanh %206 : vector<8x128xf32>
    %213 = vector.extract_strided_slice %211 {offsets = [0, 0], sizes = [8, 32], strides = [1, 1]} : vector<8x128xf32> to vector<8x32xf32>
    %214 = vector.extract_strided_slice %211 {offsets = [0, 32], sizes = [8, 32], strides = [1, 1]} : vector<8x128xf32> to vector<8x32xf32>
    %215 = vector.extract_strided_slice %212 {offsets = [0, 64], sizes = [8, 32], strides = [1, 1]} : vector<8x128xf32> to vector<8x32xf32>
    %216 = vector.extract_strided_slice %211 {offsets = [0, 96], sizes = [8, 32], strides = [1, 1]} : vector<8x128xf32> to vector<8x32xf32>
    %217 = arith.mulf %214, %178 : vector<8x32xf32>
    %218 = arith.mulf %213, %215 : vector<8x32xf32>
    %219 = arith.addf %217, %218 : vector<8x32xf32>
    %220 = math.tanh %219 : vector<8x32xf32>
    %221 = arith.mulf %216, %220 : vector<8x32xf32>
    %222 = arith.truncf %221 : vector<8x32xf32> to vector<8x32xbf16>
    %223 = arith.addf %182, %221 : vector<8x32xf32>
    %cst_50 = arith.constant dense<0.000000e+00> : vector<8x128xf32>
    %224 = tpu.matmul %201, %6, %cst_50 {dimension_numbers = #tpu.dot_dimension_numbers<[1], [0], [0], [1], [0, 0, 1, 1], [], []>} : vector<8x32xbf16>, vector<32x128xbf16>, vector<8x128xf32> -> vector<8x128xf32>
    %225 = vector.extract_strided_slice %5 {offsets = [40, 0], sizes = [8, 128], strides = [1, 1]} : vector<64x128xf32> to vector<8x128xf32>
    %226 = arith.addf %224, %225 : vector<8x128xf32>
    %227 = arith.negf %226 : vector<8x128xf32>
    %228 = math.exp %227 : vector<8x128xf32>
    %cst_51 = arith.constant 1.000000e+00 : f32
    %229 = vector.broadcast %cst_51 : f32 to vector<8x128xf32>
    %230 = arith.addf %229, %228 : vector<8x128xf32>
    %231 = arith.divf %229, %230 : vector<8x128xf32>
    %232 = math.tanh %226 : vector<8x128xf32>
    %233 = vector.extract_strided_slice %231 {offsets = [0, 0], sizes = [8, 32], strides = [1, 1]} : vector<8x128xf32> to vector<8x32xf32>
    %234 = vector.extract_strided_slice %231 {offsets = [0, 32], sizes = [8, 32], strides = [1, 1]} : vector<8x128xf32> to vector<8x32xf32>
    %235 = vector.extract_strided_slice %232 {offsets = [0, 64], sizes = [8, 32], strides = [1, 1]} : vector<8x128xf32> to vector<8x32xf32>
    %236 = vector.extract_strided_slice %231 {offsets = [0, 96], sizes = [8, 32], strides = [1, 1]} : vector<8x128xf32> to vector<8x32xf32>
    %237 = arith.mulf %234, %198 : vector<8x32xf32>
    %238 = arith.mulf %233, %235 : vector<8x32xf32>
    %239 = arith.addf %237, %238 : vector<8x32xf32>
    %240 = math.tanh %239 : vector<8x32xf32>
    %241 = arith.mulf %236, %240 : vector<8x32xf32>
    %242 = arith.truncf %241 : vector<8x32xf32> to vector<8x32xbf16>
    %cst_52 = arith.constant dense<0.000000e+00> : vector<8x128xf32>
    %243 = tpu.matmul %242, %7, %cst_52 {dimension_numbers = #tpu.dot_dimension_numbers<[1], [0], [0], [1], [0, 0, 1, 1], [], []>} : vector<8x32xbf16>, vector<32x128xbf16>, vector<8x128xf32> -> vector<8x128xf32>
    %cst_53 = arith.constant dense<0.000000e+00> : vector<8x128xf32>
    %244 = tpu.matmul %222, %8, %cst_53 {dimension_numbers = #tpu.dot_dimension_numbers<[1], [0], [0], [1], [0, 0, 1, 1], [], []>} : vector<8x32xbf16>, vector<32x128xbf16>, vector<8x128xf32> -> vector<8x128xf32>
    %245 = arith.addf %243, %244 : vector<8x128xf32>
    %246 = vector.broadcast %9 : vector<1x128xf32> to vector<8x128xf32>
    %247 = arith.addf %245, %246 : vector<8x128xf32>
    %248 = arith.negf %247 : vector<8x128xf32>
    %249 = math.exp %248 : vector<8x128xf32>
    %cst_54 = arith.constant 1.000000e+00 : f32
    %250 = vector.broadcast %cst_54 : f32 to vector<8x128xf32>
    %251 = arith.addf %250, %249 : vector<8x128xf32>
    %252 = arith.divf %250, %251 : vector<8x128xf32>
    %253 = math.tanh %247 : vector<8x128xf32>
    %254 = vector.extract_strided_slice %252 {offsets = [0, 0], sizes = [8, 32], strides = [1, 1]} : vector<8x128xf32> to vector<8x32xf32>
    %255 = vector.extract_strided_slice %252 {offsets = [0, 32], sizes = [8, 32], strides = [1, 1]} : vector<8x128xf32> to vector<8x32xf32>
    %256 = vector.extract_strided_slice %253 {offsets = [0, 64], sizes = [8, 32], strides = [1, 1]} : vector<8x128xf32> to vector<8x32xf32>
    %257 = vector.extract_strided_slice %252 {offsets = [0, 96], sizes = [8, 32], strides = [1, 1]} : vector<8x128xf32> to vector<8x32xf32>
    %258 = arith.mulf %255, %219 : vector<8x32xf32>
    %259 = arith.mulf %254, %256 : vector<8x32xf32>
    %260 = arith.addf %258, %259 : vector<8x32xf32>
    %261 = math.tanh %260 : vector<8x32xf32>
    %262 = arith.mulf %257, %261 : vector<8x32xf32>
    %263 = arith.truncf %262 : vector<8x32xf32> to vector<8x32xbf16>
    %264 = arith.addf %223, %262 : vector<8x32xf32>
    %cst_55 = arith.constant dense<0.000000e+00> : vector<8x128xf32>
    %265 = tpu.matmul %242, %6, %cst_55 {dimension_numbers = #tpu.dot_dimension_numbers<[1], [0], [0], [1], [0, 0, 1, 1], [], []>} : vector<8x32xbf16>, vector<32x128xbf16>, vector<8x128xf32> -> vector<8x128xf32>
    %266 = vector.extract_strided_slice %5 {offsets = [48, 0], sizes = [8, 128], strides = [1, 1]} : vector<64x128xf32> to vector<8x128xf32>
    %267 = arith.addf %265, %266 : vector<8x128xf32>
    %268 = arith.negf %267 : vector<8x128xf32>
    %269 = math.exp %268 : vector<8x128xf32>
    %cst_56 = arith.constant 1.000000e+00 : f32
    %270 = vector.broadcast %cst_56 : f32 to vector<8x128xf32>
    %271 = arith.addf %270, %269 : vector<8x128xf32>
    %272 = arith.divf %270, %271 : vector<8x128xf32>
    %273 = math.tanh %267 : vector<8x128xf32>
    %274 = vector.extract_strided_slice %272 {offsets = [0, 0], sizes = [8, 32], strides = [1, 1]} : vector<8x128xf32> to vector<8x32xf32>
    %275 = vector.extract_strided_slice %272 {offsets = [0, 32], sizes = [8, 32], strides = [1, 1]} : vector<8x128xf32> to vector<8x32xf32>
    %276 = vector.extract_strided_slice %273 {offsets = [0, 64], sizes = [8, 32], strides = [1, 1]} : vector<8x128xf32> to vector<8x32xf32>
    %277 = vector.extract_strided_slice %272 {offsets = [0, 96], sizes = [8, 32], strides = [1, 1]} : vector<8x128xf32> to vector<8x32xf32>
    %278 = arith.mulf %275, %239 : vector<8x32xf32>
    %279 = arith.mulf %274, %276 : vector<8x32xf32>
    %280 = arith.addf %278, %279 : vector<8x32xf32>
    %281 = math.tanh %280 : vector<8x32xf32>
    %282 = arith.mulf %277, %281 : vector<8x32xf32>
    %283 = arith.truncf %282 : vector<8x32xf32> to vector<8x32xbf16>
    %cst_57 = arith.constant dense<0.000000e+00> : vector<8x128xf32>
    %284 = tpu.matmul %283, %7, %cst_57 {dimension_numbers = #tpu.dot_dimension_numbers<[1], [0], [0], [1], [0, 0, 1, 1], [], []>} : vector<8x32xbf16>, vector<32x128xbf16>, vector<8x128xf32> -> vector<8x128xf32>
    %cst_58 = arith.constant dense<0.000000e+00> : vector<8x128xf32>
    %285 = tpu.matmul %263, %8, %cst_58 {dimension_numbers = #tpu.dot_dimension_numbers<[1], [0], [0], [1], [0, 0, 1, 1], [], []>} : vector<8x32xbf16>, vector<32x128xbf16>, vector<8x128xf32> -> vector<8x128xf32>
    %286 = arith.addf %284, %285 : vector<8x128xf32>
    %287 = vector.broadcast %9 : vector<1x128xf32> to vector<8x128xf32>
    %288 = arith.addf %286, %287 : vector<8x128xf32>
    %289 = arith.negf %288 : vector<8x128xf32>
    %290 = math.exp %289 : vector<8x128xf32>
    %cst_59 = arith.constant 1.000000e+00 : f32
    %291 = vector.broadcast %cst_59 : f32 to vector<8x128xf32>
    %292 = arith.addf %291, %290 : vector<8x128xf32>
    %293 = arith.divf %291, %292 : vector<8x128xf32>
    %294 = math.tanh %288 : vector<8x128xf32>
    %295 = vector.extract_strided_slice %293 {offsets = [0, 0], sizes = [8, 32], strides = [1, 1]} : vector<8x128xf32> to vector<8x32xf32>
    %296 = vector.extract_strided_slice %293 {offsets = [0, 32], sizes = [8, 32], strides = [1, 1]} : vector<8x128xf32> to vector<8x32xf32>
    %297 = vector.extract_strided_slice %294 {offsets = [0, 64], sizes = [8, 32], strides = [1, 1]} : vector<8x128xf32> to vector<8x32xf32>
    %298 = vector.extract_strided_slice %293 {offsets = [0, 96], sizes = [8, 32], strides = [1, 1]} : vector<8x128xf32> to vector<8x32xf32>
    %299 = arith.mulf %296, %260 : vector<8x32xf32>
    %300 = arith.mulf %295, %297 : vector<8x32xf32>
    %301 = arith.addf %299, %300 : vector<8x32xf32>
    %302 = math.tanh %301 : vector<8x32xf32>
    %303 = arith.mulf %298, %302 : vector<8x32xf32>
    %304 = arith.truncf %303 : vector<8x32xf32> to vector<8x32xbf16>
    %305 = arith.addf %264, %303 : vector<8x32xf32>
    %cst_60 = arith.constant dense<0.000000e+00> : vector<8x128xf32>
    %306 = tpu.matmul %283, %6, %cst_60 {dimension_numbers = #tpu.dot_dimension_numbers<[1], [0], [0], [1], [0, 0, 1, 1], [], []>} : vector<8x32xbf16>, vector<32x128xbf16>, vector<8x128xf32> -> vector<8x128xf32>
    %307 = vector.extract_strided_slice %5 {offsets = [56, 0], sizes = [8, 128], strides = [1, 1]} : vector<64x128xf32> to vector<8x128xf32>
    %308 = arith.addf %306, %307 : vector<8x128xf32>
    %309 = arith.negf %308 : vector<8x128xf32>
    %310 = math.exp %309 : vector<8x128xf32>
    %cst_61 = arith.constant 1.000000e+00 : f32
    %311 = vector.broadcast %cst_61 : f32 to vector<8x128xf32>
    %312 = arith.addf %311, %310 : vector<8x128xf32>
    %313 = arith.divf %311, %312 : vector<8x128xf32>
    %314 = math.tanh %308 : vector<8x128xf32>
    %315 = vector.extract_strided_slice %313 {offsets = [0, 0], sizes = [8, 32], strides = [1, 1]} : vector<8x128xf32> to vector<8x32xf32>
    %316 = vector.extract_strided_slice %313 {offsets = [0, 32], sizes = [8, 32], strides = [1, 1]} : vector<8x128xf32> to vector<8x32xf32>
    %317 = vector.extract_strided_slice %314 {offsets = [0, 64], sizes = [8, 32], strides = [1, 1]} : vector<8x128xf32> to vector<8x32xf32>
    %318 = vector.extract_strided_slice %313 {offsets = [0, 96], sizes = [8, 32], strides = [1, 1]} : vector<8x128xf32> to vector<8x32xf32>
    %319 = arith.mulf %316, %280 : vector<8x32xf32>
    %320 = arith.mulf %315, %317 : vector<8x32xf32>
    %321 = arith.addf %319, %320 : vector<8x32xf32>
    %322 = math.tanh %321 : vector<8x32xf32>
    %323 = arith.mulf %318, %322 : vector<8x32xf32>
    %324 = arith.truncf %323 : vector<8x32xf32> to vector<8x32xbf16>
    %cst_62 = arith.constant dense<0.000000e+00> : vector<8x128xf32>
    %325 = tpu.matmul %324, %7, %cst_62 {dimension_numbers = #tpu.dot_dimension_numbers<[1], [0], [0], [1], [0, 0, 1, 1], [], []>} : vector<8x32xbf16>, vector<32x128xbf16>, vector<8x128xf32> -> vector<8x128xf32>
    %cst_63 = arith.constant dense<0.000000e+00> : vector<8x128xf32>
    %326 = tpu.matmul %304, %8, %cst_63 {dimension_numbers = #tpu.dot_dimension_numbers<[1], [0], [0], [1], [0, 0, 1, 1], [], []>} : vector<8x32xbf16>, vector<32x128xbf16>, vector<8x128xf32> -> vector<8x128xf32>
    %327 = arith.addf %325, %326 : vector<8x128xf32>
    %328 = vector.broadcast %9 : vector<1x128xf32> to vector<8x128xf32>
    %329 = arith.addf %327, %328 : vector<8x128xf32>
    %330 = arith.negf %329 : vector<8x128xf32>
    %331 = math.exp %330 : vector<8x128xf32>
    %cst_64 = arith.constant 1.000000e+00 : f32
    %332 = vector.broadcast %cst_64 : f32 to vector<8x128xf32>
    %333 = arith.addf %332, %331 : vector<8x128xf32>
    %334 = arith.divf %332, %333 : vector<8x128xf32>
    %335 = math.tanh %329 : vector<8x128xf32>
    %336 = vector.extract_strided_slice %334 {offsets = [0, 0], sizes = [8, 32], strides = [1, 1]} : vector<8x128xf32> to vector<8x32xf32>
    %337 = vector.extract_strided_slice %334 {offsets = [0, 32], sizes = [8, 32], strides = [1, 1]} : vector<8x128xf32> to vector<8x32xf32>
    %338 = vector.extract_strided_slice %335 {offsets = [0, 64], sizes = [8, 32], strides = [1, 1]} : vector<8x128xf32> to vector<8x32xf32>
    %339 = vector.extract_strided_slice %334 {offsets = [0, 96], sizes = [8, 32], strides = [1, 1]} : vector<8x128xf32> to vector<8x32xf32>
    %340 = arith.mulf %337, %301 : vector<8x32xf32>
    %341 = arith.mulf %336, %338 : vector<8x32xf32>
    %342 = arith.addf %340, %341 : vector<8x32xf32>
    %343 = math.tanh %342 : vector<8x32xf32>
    %344 = arith.mulf %339, %343 : vector<8x32xf32>
    %345 = arith.addf %305, %344 : vector<8x32xf32>
    %cst_65 = arith.constant 1.250000e-01 : f32
    %346 = vector.broadcast %cst_65 : f32 to vector<8x32xf32>
    %347 = arith.mulf %345, %346 : vector<8x32xf32>
    %cst_66 = arith.constant dense<0.000000e+00> : vector<8x16xf32>
    %348 = tpu.matmul %347, %10, %cst_66 {dimension_numbers = #tpu.dot_dimension_numbers<[1], [0], [0], [1], [0, 0, 1, 1], [], []>} : vector<8x32xf32>, vector<32x16xf32>, vector<8x16xf32> -> vector<8x16xf32>
    %349 = vector.broadcast %11 : vector<1x16xf32> to vector<8x16xf32>
    %350 = arith.addf %348, %349 : vector<8x16xf32>
    %c0_67 = arith.constant 0 : index
    %c0_68 = arith.constant 0 : index
    %351 = vector.load %arg11[%c0_67, %c0_68] : memref<8x16xf32, #tpu.memory_space<vmem>>, vector<8x16xf32>
    tpu.vector_store %arg11[%c0_67, %c0_68], %350 {strides = array<i32>} : memref<8x16xf32, #tpu.memory_space<vmem>>, vector<8x16xf32>,
    %c0_69 = arith.constant 0 : index
    %c0_70 = arith.constant 0 : index
    %352 = vector.load %arg12[%c0_69, %c0_70] : memref<32x32xf32, #tpu.memory_space<vmem>>, vector<8x32xf32>
    tpu.vector_store %arg12[%c0_69, %c0_70], %323 {strides = array<i32>} : memref<32x32xf32, #tpu.memory_space<vmem>>, vector<8x32xf32>,
    %c16 = arith.constant 16 : index
    %c0_71 = arith.constant 0 : index
    %353 = vector.load %arg12[%c16, %c0_71] : memref<32x32xf32, #tpu.memory_space<vmem>>, vector<8x32xf32>
    tpu.vector_store %arg12[%c16, %c0_71], %321 {strides = array<i32>} : memref<32x32xf32, #tpu.memory_space<vmem>>, vector<8x32xf32>,
    %c8_72 = arith.constant 8 : index
    %c0_73 = arith.constant 0 : index
    %354 = vector.load %arg12[%c8_72, %c0_73] : memref<32x32xf32, #tpu.memory_space<vmem>>, vector<8x32xf32>
    tpu.vector_store %arg12[%c8_72, %c0_73], %344 {strides = array<i32>} : memref<32x32xf32, #tpu.memory_space<vmem>>, vector<8x32xf32>,
    %c24 = arith.constant 24 : index
    %c0_74 = arith.constant 0 : index
    %355 = vector.load %arg12[%c24, %c0_74] : memref<32x32xf32, #tpu.memory_space<vmem>>, vector<8x32xf32>
    tpu.vector_store %arg12[%c24, %c0_74], %342 {strides = array<i32>} : memref<32x32xf32, #tpu.memory_space<vmem>>, vector<8x32xf32>,
    return
  }
}

</mosaic_0001>

<llo_original>
// kernel: tpu_custom_call.1
$region0: #{tpu_custom_call.1}
  #allocation0 [shape = 'u32[]', space=smem, size = 0x4, offset = 0x4, fixed_abs, tag = 'smem constant byte address 0x4 - core index']
  #allocation1 [shape = 'u32[72,128]{1,0:T(1,128)}', space=vmem, size = 0x9000, scoped, tag = 'internal scratch']
  %s0 = inlined_call_operand.vmem [shape: bf16[64,32], index: 0, kind: input, shape index: {}]
  %s1 = inlined_call_operand.vmem [shape: f32[16,32], index: 1, kind: input, shape index: {}]
  %s2 = inlined_call_operand.vmem [shape: f32[16,32], index: 2, kind: input, shape index: {}]
  %s3 = inlined_call_operand.vmem [shape: bf16[32,128], index: 3, kind: input, shape index: {}]
  %s4 = inlined_call_operand.vmem [shape: bf16[32,128], index: 4, kind: input, shape index: {}]
  %s5 = inlined_call_operand.vmem [shape: f32[1,128], index: 5, kind: input, shape index: {}]
  %s6 = inlined_call_operand.vmem [shape: bf16[32,128], index: 6, kind: input, shape index: {}]
  %s7 = inlined_call_operand.hbm [shape: bf16[32,128], index: 7, kind: input, shape index: {}]
  %s8 = inlined_call_operand.vmem [shape: f32[1,128], index: 8, kind: input, shape index: {}]
  %s9 = inlined_call_operand.vmem [shape: f32[32,16], index: 9, kind: input, shape index: {}]
  %s10 = inlined_call_operand.vmem [shape: f32[1,16], index: 10, kind: input, shape index: {}]
  %s11 = inlined_call_operand.hbm [shape: f32[8,16], index: 11, kind: output, shape index: {0}]
  %s12 = inlined_call_operand.hbm [shape: f32[32,32], index: 12, kind: output, shape index: {1}]
  %13 = xla_tuple %s11, %s12
  %s14 = sld [smem:[#allocation0]]
  $region66: #{tpu_custom_call.1} parent=0
    _
  %s16 = ssub.s32 1, %s14
  %s17 = scalar_select 0, %s16, %s14
  $region1: #{tpu_custom_call.1} parent=0
    #allocation2 [shape = 'u8[8192]{0}', space=vmem, size = 0x2000, scoped, tag = 'input window, operand 7, single buffered']
    #allocation3 [shape = 's32[1]{0}', space=sflag, size = 0x4, scoped, tag = 'scoped memory for tpu_custom_call.1']
    #allocation4 [shape = 's32[1]{0}', space=sflag, size = 0x4, scoped, tag = 'scoped memory for tpu_custom_call.1']
    #allocation5 [shape = 'u8[4096]{0}', space=vmem, size = 0x1000, scoped, tag = 'output window, operand 0, single buffered']
    #allocation6 [shape = 'u8[16384]{0}', space=vmem, size = 0x4000, scoped, tag = 'output window, operand 1, single buffered']
    #allocation7 [shape = 's32[1]{0}', space=sflag, size = 0x4, scoped, tag = 'scoped memory for tpu_custom_call.1']
    %18 = vsyncpa [#allocation3], 0
    %19 = vsyncpa [#allocation4], 0
    %20 = vsyncpa [#allocation7], 0
    // Predicated region
    $region2: #{tpu_custom_call.1} parent=1 // pred_check
      _
    $region3: #{tpu_custom_call.1} parent=1 // pred_check_branch
      %22 = sbr.rel (0) target = $region5
    $region4: #{tpu_custom_call.1} parent=1 // pred_region
      _
    $region5: #{tpu_custom_call.1} parent=1 // pred_fallthru
      _
    // Predicated region
    $region6: #{tpu_custom_call.1} parent=1 // pred_check
      _
    $region7: #{tpu_custom_call.1} parent=1 // pred_check_branch
      %24 = sbr.rel (0) target = $region9
    $region8: #{tpu_custom_call.1} parent=1 // pred_region
      _
    $region9: #{tpu_custom_call.1} parent=1 // pred_fallthru
      _
    // Predicated region
    $region10: #{tpu_custom_call.1} parent=1 // pred_check
      _
    $region11: #{tpu_custom_call.1} parent=1 // pred_check_branch
      %26 = sbr.rel (0) target = $region13
    $region12: #{tpu_custom_call.1} parent=1 // pred_region
      _
    $region13: #{tpu_custom_call.1} parent=1 // pred_fallthru
      _
    // Predicated region
    $region14: #{tpu_custom_call.1} parent=1 // pred_check
      _
    $region15: #{tpu_custom_call.1} parent=1 // pred_check_branch
      %28 = sbr.rel (0) target = $region17
    $region16: #{tpu_custom_call.1} parent=1 // pred_region
      _
    $region17: #{tpu_custom_call.1} parent=1 // pred_fallthru
      _
    // Predicated region
    $region18: #{tpu_custom_call.1} parent=1 // pred_check
      _
    $region19: #{tpu_custom_call.1} parent=1 // pred_check_branch
      %30 = sbr.rel (0) target = $region21
    $region20: #{tpu_custom_call.1} parent=1 // pred_region
      _
    $region21: #{tpu_custom_call.1} parent=1 // pred_fallthru
      _
    // Predicated region
    $region22: #{tpu_custom_call.1} parent=1 // pred_check
      _
    $region23: #{tpu_custom_call.1} parent=1 // pred_check_branch
      %32 = sbr.rel (0) target = $region25
    $region24: #{tpu_custom_call.1} parent=1 // pred_region
      _
    $region25: #{tpu_custom_call.1} parent=1 // pred_fallthru
      _
    // Predicated region
    $region26: #{tpu_custom_call.1} parent=1 // pred_check
      _
    $region27: #{tpu_custom_call.1} parent=1 // pred_check_branch
      %34 = sbr.rel (0) target = $region29
    $region28: #{tpu_custom_call.1} parent=1 // pred_region
      _
    $region29: #{tpu_custom_call.1} parent=1 // pred_fallthru
      _
    // Predicated region
    $region30: #{tpu_custom_call.1} parent=1 // pred_check
      _
    $region31: #{tpu_custom_call.1} parent=1 // pred_check_branch
      %36 = sbr.rel (0) target = $region33
    $region32: #{tpu_custom_call.1} parent=1 // pred_region
      %38 = vsyncadd [#allocation3], 0
      %s39 = sshll.u32 %s7, 4
      %s40 = int_to_ptr.hbm [resolvable:$true] %s39
      %s41 = sshll.u32 [#allocation2], 4
      %s42 = int_to_ptr.vmem [resolvable:$true] %s41
      %47 = dma.hbm_to_vmem [thread:$0]  %s40, 256, %s42, [#allocation3], 64, 64, 4
    $region33: #{tpu_custom_call.1} parent=1 // pred_fallthru
      _
    // Predicated region
    $region34: #{tpu_custom_call.1} parent=1 // pred_check
      _
    $region35: #{tpu_custom_call.1} parent=1 // pred_check_branch
      %49 = sbr.rel (0) target = $region37
    $region36: #{tpu_custom_call.1} parent=1 // pred_region
      _
    $region37: #{tpu_custom_call.1} parent=1 // pred_fallthru
      _
    // Predicated region
    $region38: #{tpu_custom_call.1} parent=1 // pred_check
      _
    $region39: #{tpu_custom_call.1} parent=1 // pred_check_branch
      %51 = sbr.rel (0) target = $region41
    $region40: #{tpu_custom_call.1} parent=1 // pred_region
      _
    $region41: #{tpu_custom_call.1} parent=1 // pred_fallthru
      _
    // Predicated region
    $region42: #{tpu_custom_call.1} parent=1 // pred_check
      _
    $region43: #{tpu_custom_call.1} parent=1 // pred_check_branch
      %53 = sbr.rel (0) target = $region45
    $region44: #{tpu_custom_call.1} parent=1 // pred_region
      _
    $region45: #{tpu_custom_call.1} parent=1 // pred_fallthru
      _
    // Predicated region
    $region46: #{tpu_custom_call.1} parent=1 // pred_check
      _
    $region47: #{tpu_custom_call.1} parent=1 // pred_check_branch
      %55 = sbr.rel (0) target = $region49
    $region48: #{tpu_custom_call.1} parent=1 // pred_region
      %57 = dma.done [#allocation3], 256
    $region49: #{tpu_custom_call.1} parent=1 // pred_fallthru
      _
    %v59 = vld [vmem:[%s0] sm:$0xf]
    %v60 = vld [vmem:[%s0 + $0x4] sm:$0xf]
    %v61 = vld [vmem:[%s0 + $0x8] sm:$0xf]
    %v62 = vld [vmem:[%s0 + $0xc] sm:$0xf]
    %v63 = vld [vmem:[%s0 + $0x10] sm:$0xf]
    %v64 = vld [vmem:[%s0 + $0x14] sm:$0xf]
    %v65 = vld [vmem:[%s0 + $0x18] sm:$0xf]
    %v66 = vld [vmem:[%s0 + $0x1c] sm:$0xf]
    %v67 = vld [vmem:[%s3] sm:$0xf]
    %v68 = vld [vmem:[%s3 + $0x4] sm:$0xf]
    %v69 = vld [vmem:[%s3 + $0x8] sm:$0xf]
    %v70 = vld [vmem:[%s3 + $0xc] sm:$0xf]
    %v71 = vld [vmem:[%s5] sm:$0x1]
    %v73 = vperm.slane %v71, 0
    %v83 = vunpack.c.l.b16 %v59
    %v84 = vunpack.c.l.b16 %v60
    %v85 = vunpack.c.l.b16 %v61
    %v86 = vunpack.c.l.b16 %v62
    %v87 = vunpack.c.l.b16 %v63
    %v88 = vunpack.c.l.b16 %v64
    %v89 = vunpack.c.l.b16 %v65
    %v90 = vunpack.c.l.b16 %v66
    %v91 = vpack.c.b16 %v84, %v83
    %v92 = vpack.c.b16 %v86, %v85
    %v93 = vpack.c.b16 %v88, %v87
    %v94 = vpack.c.b16 %v90, %v89
    %v99 = vunpack.c.l.b16 %v67
    %v100 = vunpack.c.l.b16 %v68
    %v101 = vunpack.c.l.b16 %v69
    %v102 = vunpack.c.l.b16 %v70
    %v103 = vpack.c.b16 %v100, %v99
    %v104 = vpack.c.b16 %v102, %v101
    %vm107 = vcmask 261120
    %v109 = vsel %vm107, %v91, 0
    %v112 = vsel %vm107, %v92, 0
    %v115 = vsel %vm107, %v93, 0
    %v118 = vsel %vm107, %v94, 0
    %120 = vmatpush.bf16.msra.mxu0 0
    %121 = vmatpush.bf16.msra.mxu0 0
    %122 = vmatpush.bf16.msra.mxu0 0
    %123 = vmatpush.bf16.msra.mxu0 0
    %124 = vmatpush.bf16.msra.mxu0 0
    %125 = vmatpush.bf16.msra.mxu0 0
    %126 = vmatpush.bf16.msra.mxu0 %v104
    %127 = vmatpush.bf16.msra.mxu0 %v103
    %128 = vmatmul.bf16.gmra.mxu0 %v109
    %v129 = vpop.f32.mrf.mxu0
    %v130 = vadd.f32 %v73, %v129
    %v131 = vpop.f32.mrf.mxu0
    %v132 = vadd.f32 %v73, %v131
    %133 = vmatmul.bf16.gmra.mxu0 %v112
    %v134 = vpop.f32.mrf.mxu0
    %v135 = vadd.f32 %v73, %v134
    %v136 = vpop.f32.mrf.mxu0
    %v137 = vadd.f32 %v73, %v136
    %138 = vmatmul.bf16.gmra.mxu0 %v115
    %v139 = vpop.f32.mrf.mxu0
    %v140 = vadd.f32 %v73, %v139
    %v141 = vpop.f32.mrf.mxu0
    %v142 = vadd.f32 %v73, %v141
    %143 = vmatmul.bf16.gmra.mxu0 %v118
    %v144 = vpop.f32.mrf.mxu0
    %v145 = vadd.f32 %v73, %v144
    %v146 = vpop.f32.mrf.mxu0
    %v147 = vadd.f32 %v73, %v146
    %148 = vdwg.mxu0
    %v149 = vld [vmem:[%s4] sm:$0xf]
    %v150 = vld [vmem:[%s4 + $0x4] sm:$0xf]
    %v151 = vld [vmem:[%s4 + $0x8] sm:$0xf]
    %v152 = vld [vmem:[%s4 + $0xc] sm:$0xf]
    %v153 = vld [vmem:[%s6] sm:$0xf]
    %v154 = vld [vmem:[%s6 + $0x4] sm:$0xf]
    %v155 = vld [vmem:[%s6 + $0x8] sm:$0xf]
    %v156 = vld [vmem:[%s6 + $0xc] sm:$0xf]
    %v157 = vld [vmem:[#allocation2] sm:$0xf]
    %v158 = vld [vmem:[#allocation2 + $0x4] sm:$0xf]
    %v159 = vld [vmem:[#allocation2 + $0x8] sm:$0xf]
    %v160 = vld [vmem:[#allocation2 + $0xc] sm:$0xf]
    %v161 = vld [vmem:[%s8] sm:$0x1]
    %v162 = vld [vmem:[%s9] sm:$0xff]
    %v163 = vld [vmem:[%s9 + $0x8] sm:$0xff]
    %v164 = vld [vmem:[%s9 + $0x10] sm:$0xff]
    %v165 = vld [vmem:[%s9 + $0x18] sm:$0xff]
    %v166 = vld [vmem:[%s10] sm:$0x1]
    %v167 = vld [vmem:[%s1] sm:$0xff]
    %v168 = vld [vmem:[%s1 + $0x8] sm:$0xff]
    %v169 = vld [vmem:[%s2] sm:$0xff]
    %v170 = vld [vmem:[%s2 + $0x8] sm:$0xff]
    %v171 = vpack.c.bf16 %v167, %v167
    %v172 = vpack.c.bf16 %v168, %v168
    %v177 = vunpack.c.l.b16 %v149
    %v178 = vunpack.c.l.b16 %v150
    %v179 = vunpack.c.l.b16 %v151
    %v180 = vunpack.c.l.b16 %v152
    %v181 = vpack.c.b16 %v178, %v177
    %v182 = vpack.c.b16 %v180, %v179
    %v186 = vsel %vm107, %v171, 0
    %188 = vmatpush.bf16.msra.mxu0 0
    %189 = vmatpush.bf16.msra.mxu0 0
    %190 = vmatpush.bf16.msra.mxu0 0
    %191 = vmatpush.bf16.msra.mxu0 0
    %192 = vmatpush.bf16.msra.mxu0 0
    %193 = vmatpush.bf16.msra.mxu0 0
    %194 = vmatpush.bf16.msra.mxu0 %v182
    %195 = vmatpush.bf16.msra.mxu0 %v181
    %196 = vmatmul.bf16.gmra.mxu0 %v186
    %v197 = vpop.f32.mrf.mxu0
    %v198 = vadd.f32 %v130, %v197
    %v199 = vpop.f32.mrf.mxu0
    %200 = vdwg.mxu0
    %v201 = vxor.u32 %v198, 2147483648
    %v202 = vmul.f32 %v201, 1.442695
    %v203 = vpow.pop %v202
    %v204 = vadd.f32 %v203, 1.0
    %v205 = vrcp.pop %v204
    %v206 = vmul.f32 %v204, %v205
    %v207 = vsub.f32 1.0, %v206
    %v208 = vmul.f32 %v205, %v207
    %v209 = vadd.f32 %v205, %v208
    %vm210 = vweird.f32 %v204
    %vm211 = vweird.f32 %v205
    %vm212 = vmor %vm210, %vm211
    %v213 = vsel %vm212, %v205, %v209
    %v214 = vand.u32 2147483647, %v204
    %vm215 = vcmp.eq.f32.partialorder %v214, 8.507059e+37
    %v216 = vand.u32 %v204, 2147483648
    %v217 = vor.u32 1.1754944e-38, %v216
    %v218 = vsel %vm215, %v217, %v213
    %v219 = vmul.f32 1.0, %v218
    %v220 = vtanh.pop %v198
    %222 = vrot.lane.b32.xlu0 %v169, 32
    %v223 = vpop.permute.xlu0 %222
    %v225 = vmul.f32 %v219, %v223
    %227 = vrot.lane.b32.xlu0 %v220, 64
    %v228 = vpop.permute.xlu0 %227
    %v230 = vmul.f32 %v219, %v228
    %232 = vrot.lane.b32.xlu0 %v230, 32
    %v233 = vpop.permute.xlu0 %232
    %v235 = vadd.f32 %v225, %v233
    %v236 = vtanh.pop %v235
    %238 = vrot.lane.b32.xlu0 %v236, 64
    %v239 = vpop.permute.xlu0 %238
    %v241 = vmul.f32 %v219, %v239
    %v242 = vpack.c.bf16 %v241, %v241
    %v247 = vunpack.c.l.b16 %v157
    %v248 = vunpack.c.l.b16 %v158
    %v249 = vunpack.c.l.b16 %v159
    %v250 = vunpack.c.l.b16 %v160
    %v251 = vpack.c.b16 %v248, %v247
    %v252 = vpack.c.b16 %v250, %v249
    %v256 = vsel %vm107, %v172, 0
    %258 = vmatpush.bf16.msra.mxu0 0
    %259 = vmatpush.bf16.msra.mxu0 0
    %260 = vmatpush.bf16.msra.mxu0 0
    %261 = vmatpush.bf16.msra.mxu0 0
    %262 = vmatpush.bf16.msra.mxu0 0
    %263 = vmatpush.bf16.msra.mxu0 0
    %264 = vmatpush.bf16.msra.mxu0 %v252
    %265 = vmatpush.bf16.msra.mxu0 %v251
    %266 = vmatmul.bf16.gmra.mxu0 %v256
    %v267 = vpop.f32.mrf.mxu0
    %v268 = vadd.f32 0.0, %v267
    %v269 = vpop.f32.mrf.mxu0
    %270 = vdwg.mxu0
    %272 = vrot.lane.b32.xlu0 %v242, 32
    %v273 = vpop.permute.xlu0 %272
    %v278 = vunpack.c.l.b16 %v153
    %v279 = vunpack.c.l.b16 %v154
    %v280 = vunpack.c.l.b16 %v155
    %v281 = vunpack.c.l.b16 %v156
    %v282 = vpack.c.b16 %v279, %v278
    %v283 = vpack.c.b16 %v281, %v280
    %v287 = vsel %vm107, %v273, 0
    %289 = vmatpush.bf16.msra.mxu0 0
    %290 = vmatpush.bf16.msra.mxu0 0
    %291 = vmatpush.bf16.msra.mxu0 0
    %292 = vmatpush.bf16.msra.mxu0 0
    %293 = vmatpush.bf16.msra.mxu0 0
    %294 = vmatpush.bf16.msra.mxu0 0
    %295 = vmatpush.bf16.msra.mxu0 %v283
    %296 = vmatpush.bf16.msra.mxu0 %v282
    %297 = vmatmul.bf16.gmra.mxu0 %v287
    %v298 = vpop.f32.mrf.mxu0
    %v299 = vadd.f32 %v268, %v298
    %v300 = vpop.f32.mrf.mxu0
    %301 = vdwg.mxu0
    %v303 = vperm.slane %v161, 0
    %v305 = vadd.f32 %v299, %v303
    %v306 = vxor.u32 %v305, 2147483648
    %v307 = vmul.f32 %v306, 1.442695
    %v308 = vpow.pop %v307
    %v309 = vadd.f32 %v308, 1.0
    %v310 = vrcp.pop %v309
    %v311 = vmul.f32 %v309, %v310
    %v312 = vsub.f32 1.0, %v311
    %v313 = vmul.f32 %v310, %v312
    %v314 = vadd.f32 %v310, %v313
    %vm315 = vweird.f32 %v309
    %vm316 = vweird.f32 %v310
    %vm317 = vmor %vm315, %vm316
    %v318 = vsel %vm317, %v310, %v314
    %v319 = vand.u32 2147483647, %v309
    %vm320 = vcmp.eq.f32.partialorder %v319, 8.507059e+37
    %v321 = vand.u32 %v309, 2147483648
    %v322 = vor.u32 1.1754944e-38, %v321
    %v323 = vsel %vm320, %v322, %v318
    %v324 = vmul.f32 1.0, %v323
    %v325 = vtanh.pop %v305
    %327 = vrot.lane.b32.xlu0 %v170, 32
    %v328 = vpop.permute.xlu0 %327
    %v330 = vmul.f32 %v324, %v328
    %332 = vrot.lane.b32.xlu0 %v325, 64
    %v333 = vpop.permute.xlu0 %332
    %v335 = vmul.f32 %v324, %v333
    %337 = vrot.lane.b32.xlu0 %v335, 32
    %v338 = vpop.permute.xlu0 %337
    %v340 = vadd.f32 %v330, %v338
    %v341 = vtanh.pop %v340
    %343 = vrot.lane.b32.xlu0 %v341, 64
    %v344 = vpop.permute.xlu0 %343
    %v346 = vmul.f32 %v324, %v344
    %v347 = vpack.c.bf16 %v346, %v346
    %v348 = vadd.f32 %v346, 0.0
    %349 = vmatpush.bf16.msra.mxu0 0
    %350 = vmatpush.bf16.msra.mxu0 0
    %351 = vmatpush.bf16.msra.mxu0 0
    %352 = vmatpush.bf16.msra.mxu0 0
    %353 = vmatpush.bf16.msra.mxu0 0
    %354 = vmatpush.bf16.msra.mxu0 0
    %355 = vmatpush.bf16.msra.mxu0 %v182
    %356 = vmatpush.bf16.msra.mxu0 %v181
    %357 = vmatmul.bf16.gmra.mxu0 %v287
    %v358 = vpop.f32.mrf.mxu0
    %v359 = vadd.f32 %v132, %v358
    %v360 = vpop.f32.mrf.mxu0
    %361 = vdwg.mxu0
    %v362 = vxor.u32 %v359, 2147483648
    %v363 = vmul.f32 %v362, 1.442695
    %v364 = vpow.pop %v363
    %v365 = vadd.f32 %v364, 1.0
    %v366 = vrcp.pop %v365
    %v367 = vmul.f32 %v365, %v366
    %v368 = vsub.f32 1.0, %v367
    %v369 = vmul.f32 %v366, %v368
    %v370 = vadd.f32 %v366, %v369
    %vm371 = vweird.f32 %v365
    %vm372 = vweird.f32 %v366
    %vm373 = vmor %vm371, %vm372
    %v374 = vsel %vm373, %v366, %v370
    %v375 = vand.u32 2147483647, %v365
    %vm376 = vcmp.eq.f32.partialorder %v375, 8.507059e+37
    %v377 = vand.u32 %v365, 2147483648
    %v378 = vor.u32 1.1754944e-38, %v377
    %v379 = vsel %vm376, %v378, %v374
    %v380 = vmul.f32 1.0, %v379
    %v381 = vtanh.pop %v359
    %v382 = vmul.f32 %v380, %v235
    %384 = vrot.lane.b32.xlu0 %v381, 64
    %v385 = vpop.permute.xlu0 %384
    %v387 = vmul.f32 %v380, %v385
    %389 = vrot.lane.b32.xlu0 %v387, 32
    %v390 = vpop.permute.xlu0 %389
    %v392 = vadd.f32 %v382, %v390
    %v393 = vtanh.pop %v392
    %395 = vrot.lane.b32.xlu0 %v393, 64
    %v396 = vpop.permute.xlu0 %395
    %v398 = vmul.f32 %v380, %v396
    %v399 = vpack.c.bf16 %v398, %v398
    %401 = vrot.lane.b32.xlu0 %v347, 32
    %v402 = vpop.permute.xlu0 %401
    %v404 = vsel %vm107, %v402, 0
    %406 = vmatpush.bf16.msra.mxu0 0
    %407 = vmatpush.bf16.msra.mxu0 0
    %408 = vmatpush.bf16.msra.mxu0 0
    %409 = vmatpush.bf16.msra.mxu0 0
    %410 = vmatpush.bf16.msra.mxu0 0
    %411 = vmatpush.bf16.msra.mxu0 0
    %412 = vmatpush.bf16.msra.mxu0 %v252
    %413 = vmatpush.bf16.msra.mxu0 %v251
    %414 = vmatmul.bf16.gmra.mxu0 %v404
    %v415 = vpop.f32.mrf.mxu0
    %v416 = vadd.f32 0.0, %v415
    %v417 = vpop.f32.mrf.mxu0
    %418 = vdwg.mxu0
    %420 = vrot.lane.b32.xlu0 %v399, 32
    %v421 = vpop.permute.xlu0 %420
    %v423 = vsel %vm107, %v421, 0
    %425 = vmatpush.bf16.msra.mxu0 0
    %426 = vmatpush.bf16.msra.mxu0 0
    %427 = vmatpush.bf16.msra.mxu0 0
    %428 = vmatpush.bf16.msra.mxu0 0
    %429 = vmatpush.bf16.msra.mxu0 0
    %430 = vmatpush.bf16.msra.mxu0 0
    %431 = vmatpush.bf16.msra.mxu0 %v283
    %432 = vmatpush.bf16.msra.mxu0 %v282
    %433 = vmatmul.bf16.gmra.mxu0 %v423
    %v434 = vpop.f32.mrf.mxu0
    %v435 = vadd.f32 %v416, %v434
    %v436 = vpop.f32.mrf.mxu0
    %437 = vdwg.mxu0
    %v438 = vadd.f32 %v435, %v303
    %v439 = vxor.u32 %v438, 2147483648
    %v440 = vmul.f32 %v439, 1.442695
    %v441 = vpow.pop %v440
    %v442 = vadd.f32 %v441, 1.0
    %v443 = vrcp.pop %v442
    %v444 = vmul.f32 %v442, %v443
    %v445 = vsub.f32 1.0, %v444
    %v446 = vmul.f32 %v443, %v445
    %v447 = vadd.f32 %v443, %v446
    %vm448 = vweird.f32 %v442
    %vm449 = vweird.f32 %v443
    %vm450 = vmor %vm448, %vm449
    %v451 = vsel %vm450, %v443, %v447
    %v452 = vand.u32 2147483647, %v442
    %vm453 = vcmp.eq.f32.partialorder %v452, 8.507059e+37
    %v454 = vand.u32 %v442, 2147483648
    %v455 = vor.u32 1.1754944e-38, %v454
    %v456 = vsel %vm453, %v455, %v451
    %v457 = vmul.f32 1.0, %v456
    %v458 = vtanh.pop %v438
    %v459 = vmul.f32 %v457, %v340
    %461 = vrot.lane.b32.xlu0 %v458, 64
    %v462 = vpop.permute.xlu0 %461
    %v464 = vmul.f32 %v457, %v462
    %466 = vrot.lane.b32.xlu0 %v464, 32
    %v467 = vpop.permute.xlu0 %466
    %v469 = vadd.f32 %v459, %v467
    %v470 = vtanh.pop %v469
    %472 = vrot.lane.b32.xlu0 %v470, 64
    %v473 = vpop.permute.xlu0 %472
    %v475 = vmul.f32 %v457, %v473
    %v476 = vpack.c.bf16 %v475, %v475
    %v477 = vadd.f32 %v348, %v475
    %478 = vmatpush.bf16.msra.mxu0 0
    %479 = vmatpush.bf16.msra.mxu0 0
    %480 = vmatpush.bf16.msra.mxu0 0
    %481 = vmatpush.bf16.msra.mxu0 0
    %482 = vmatpush.bf16.msra.mxu0 0
    %483 = vmatpush.bf16.msra.mxu0 0
    %484 = vmatpush.bf16.msra.mxu0 %v182
    %485 = vmatpush.bf16.msra.mxu0 %v181
    %486 = vmatmul.bf16.gmra.mxu0 %v423
    %v487 = vpop.f32.mrf.mxu0
    %v488 = vadd.f32 %v135, %v487
    %v489 = vpop.f32.mrf.mxu0
    %490 = vdwg.mxu0
    %v491 = vxor.u32 %v488, 2147483648
    %v492 = vmul.f32 %v491, 1.442695
    %v493 = vpow.pop %v492
    %v494 = vadd.f32 %v493, 1.0
    %v495 = vrcp.pop %v494
    %v496 = vmul.f32 %v494, %v495
    %v497 = vsub.f32 1.0, %v496
    %v498 = vmul.f32 %v495, %v497
    %v499 = vadd.f32 %v495, %v498
    %vm500 = vweird.f32 %v494
    %vm501 = vweird.f32 %v495
    %vm502 = vmor %vm500, %vm501
    %v503 = vsel %vm502, %v495, %v499
    %v504 = vand.u32 2147483647, %v494
    %vm505 = vcmp.eq.f32.partialorder %v504, 8.507059e+37
    %v506 = vand.u32 %v494, 2147483648
    %v507 = vor.u32 1.1754944e-38, %v506
    %v508 = vsel %vm505, %v507, %v503
    %v509 = vmul.f32 1.0, %v508
    %v510 = vtanh.pop %v488
    %v511 = vmul.f32 %v509, %v392
    %513 = vrot.lane.b32.xlu0 %v510, 64
    %v514 = vpop.permute.xlu0 %513
    %v516 = vmul.f32 %v509, %v514
    %518 = vrot.lane.b32.xlu0 %v516, 32
    %v519 = vpop.permute.xlu0 %518
    %v521 = vadd.f32 %v511, %v519
    %v522 = vtanh.pop %v521
    %524 = vrot.lane.b32.xlu0 %v522, 64
    %v525 = vpop.permute.xlu0 %524
    %v527 = vmul.f32 %v509, %v525
    %v528 = vpack.c.bf16 %v527, %v527
    %530 = vrot.lane.b32.xlu0 %v476, 32
    %v531 = vpop.permute.xlu0 %530
    %v533 = vsel %vm107, %v531, 0
    %535 = vmatpush.bf16.msra.mxu0 0
    %536 = vmatpush.bf16.msra.mxu0 0
    %537 = vmatpush.bf16.msra.mxu0 0
    %538 = vmatpush.bf16.msra.mxu0 0
    %539 = vmatpush.bf16.msra.mxu0 0
    %540 = vmatpush.bf16.msra.mxu0 0
    %541 = vmatpush.bf16.msra.mxu0 %v252
    %542 = vmatpush.bf16.msra.mxu0 %v251
    %543 = vmatmul.bf16.gmra.mxu0 %v533
    %v544 = vpop.f32.mrf.mxu0
    %v545 = vadd.f32 0.0, %v544
    %v546 = vpop.f32.mrf.mxu0
    %547 = vdwg.mxu0
    %549 = vrot.lane.b32.xlu0 %v528, 32
    %v550 = vpop.permute.xlu0 %549
    %v552 = vsel %vm107, %v550, 0
    %554 = vmatpush.bf16.msra.mxu0 0
    %555 = vmatpush.bf16.msra.mxu0 0
    %556 = vmatpush.bf16.msra.mxu0 0
    %557 = vmatpush.bf16.msra.mxu0 0
    %558 = vmatpush.bf16.msra.mxu0 0
    %559 = vmatpush.bf16.msra.mxu0 0
    %560 = vmatpush.bf16.msra.mxu0 %v283
    %561 = vmatpush.bf16.msra.mxu0 %v282
    %562 = vmatmul.bf16.gmra.mxu0 %v552
    %v563 = vpop.f32.mrf.mxu0
    %v564 = vadd.f32 %v545, %v563
    %v565 = vpop.f32.mrf.mxu0
    %566 = vdwg.mxu0
    %v567 = vadd.f32 %v564, %v303
    %v568 = vxor.u32 %v567, 2147483648
    %v569 = vmul.f32 %v568, 1.442695
    %v570 = vpow.pop %v569
    %v571 = vadd.f32 %v570, 1.0
    %v572 = vrcp.pop %v571
    %v573 = vmul.f32 %v571, %v572
    %v574 = vsub.f32 1.0, %v573
    %v575 = vmul.f32 %v572, %v574
    %v576 = vadd.f32 %v572, %v575
    %vm577 = vweird.f32 %v571
    %vm578 = vweird.f32 %v572
    %vm579 = vmor %vm577, %vm578
    %v580 = vsel %vm579, %v572, %v576
    %v581 = vand.u32 2147483647, %v571
    %vm582 = vcmp.eq.f32.partialorder %v581, 8.507059e+37
    %v583 = vand.u32 %v571, 2147483648
    %v584 = vor.u32 1.1754944e-38, %v583
    %v585 = vsel %vm582, %v584, %v580
    %v586 = vmul.f32 1.0, %v585
    %v587 = vtanh.pop %v567
    %v588 = vmul.f32 %v586, %v469
    %590 = vrot.lane.b32.xlu0 %v587, 64
    %v591 = vpop.permute.xlu0 %590
    %v593 = vmul.f32 %v586, %v591
    %595 = vrot.lane.b32.xlu0 %v593, 32
    %v596 = vpop.permute.xlu0 %595
    %v598 = vadd.f32 %v588, %v596
    %v599 = vtanh.pop %v598
    %601 = vrot.lane.b32.xlu0 %v599, 64
    %v602 = vpop.permute.xlu0 %601
    %v604 = vmul.f32 %v586, %v602
    %v605 = vpack.c.bf16 %v604, %v604
    %v606 = vadd.f32 %v477, %v604
    %607 = vmatpush.bf16.msra.mxu0 0
    %608 = vmatpush.bf16.msra.mxu0 0
    %609 = vmatpush.bf16.msra.mxu0 0
    %610 = vmatpush.bf16.msra.mxu0 0
    %611 = vmatpush.bf16.msra.mxu0 0
    %612 = vmatpush.bf16.msra.mxu0 0
    %613 = vmatpush.bf16.msra.mxu0 %v182
    %614 = vmatpush.bf16.msra.mxu0 %v181
    %615 = vmatmul.bf16.gmra.mxu0 %v552
    %v616 = vpop.f32.mrf.mxu0
    %v617 = vadd.f32 %v137, %v616
    %v618 = vpop.f32.mrf.mxu0
    %619 = vdwg.mxu0
    %v620 = vxor.u32 %v617, 2147483648
    %v621 = vmul.f32 %v620, 1.442695
    %v622 = vpow.pop %v621
    %v623 = vadd.f32 %v622, 1.0
    %v624 = vrcp.pop %v623
    %v625 = vmul.f32 %v623, %v624
    %v626 = vsub.f32 1.0, %v625
    %v627 = vmul.f32 %v624, %v626
    %v628 = vadd.f32 %v624, %v627
    %vm629 = vweird.f32 %v623
    %vm630 = vweird.f32 %v624
    %vm631 = vmor %vm629, %vm630
    %v632 = vsel %vm631, %v624, %v628
    %v633 = vand.u32 2147483647, %v623
    %vm634 = vcmp.eq.f32.partialorder %v633, 8.507059e+37
    %v635 = vand.u32 %v623, 2147483648
    %v636 = vor.u32 1.1754944e-38, %v635
    %v637 = vsel %vm634, %v636, %v632
    %v638 = vmul.f32 1.0, %v637
    %v639 = vtanh.pop %v617
    %v640 = vmul.f32 %v638, %v521
    %642 = vrot.lane.b32.xlu0 %v639, 64
    %v643 = vpop.permute.xlu0 %642
    %v645 = vmul.f32 %v638, %v643
    %647 = vrot.lane.b32.xlu0 %v645, 32
    %v648 = vpop.permute.xlu0 %647
    %v650 = vadd.f32 %v640, %v648
    %v651 = vtanh.pop %v650
    %653 = vrot.lane.b32.xlu0 %v651, 64
    %v654 = vpop.permute.xlu0 %653
    %v656 = vmul.f32 %v638, %v654
    %v657 = vpack.c.bf16 %v656, %v656
    %659 = vrot.lane.b32.xlu0 %v605, 32
    %v660 = vpop.permute.xlu0 %659
    %v662 = vsel %vm107, %v660, 0
    %664 = vmatpush.bf16.msra.mxu0 0
    %665 = vmatpush.bf16.msra.mxu0 0
    %666 = vmatpush.bf16.msra.mxu0 0
    %667 = vmatpush.bf16.msra.mxu0 0
    %668 = vmatpush.bf16.msra.mxu0 0
    %669 = vmatpush.bf16.msra.mxu0 0
    %670 = vmatpush.bf16.msra.mxu0 %v252
    %671 = vmatpush.bf16.msra.mxu0 %v251
    %672 = vmatmul.bf16.gmra.mxu0 %v662
    %v673 = vpop.f32.mrf.mxu0
    %v674 = vadd.f32 0.0, %v673
    %v675 = vpop.f32.mrf.mxu0
    %676 = vdwg.mxu0
    %678 = vrot.lane.b32.xlu0 %v657, 32
    %v679 = vpop.permute.xlu0 %678
    %v681 = vsel %vm107, %v679, 0
    %683 = vmatpush.bf16.msra.mxu0 0
    %684 = vmatpush.bf16.msra.mxu0 0
    %685 = vmatpush.bf16.msra.mxu0 0
    %686 = vmatpush.bf16.msra.mxu0 0
    %687 = vmatpush.bf16.msra.mxu0 0
    %688 = vmatpush.bf16.msra.mxu0 0
    %689 = vmatpush.bf16.msra.mxu0 %v283
    %690 = vmatpush.bf16.msra.mxu0 %v282
    %691 = vmatmul.bf16.gmra.mxu0 %v681
    %v692 = vpop.f32.mrf.mxu0
    %v693 = vadd.f32 %v674, %v692
    %v694 = vpop.f32.mrf.mxu0
    %695 = vdwg.mxu0
    %v696 = vadd.f32 %v693, %v303
    %v697 = vxor.u32 %v696, 2147483648
    %v698 = vmul.f32 %v697, 1.442695
    %v699 = vpow.pop %v698
    %v700 = vadd.f32 %v699, 1.0
    %v701 = vrcp.pop %v700
    %v702 = vmul.f32 %v700, %v701
    %v703 = vsub.f32 1.0, %v702
    %v704 = vmul.f32 %v701, %v703
    %v705 = vadd.f32 %v701, %v704
    %vm706 = vweird.f32 %v700
    %vm707 = vweird.f32 %v701
    %vm708 = vmor %vm706, %vm707
    %v709 = vsel %vm708, %v701, %v705
    %v710 = vand.u32 2147483647, %v700
    %vm711 = vcmp.eq.f32.partialorder %v710, 8.507059e+37
    %v712 = vand.u32 %v700, 2147483648
    %v713 = vor.u32 1.1754944e-38, %v712
    %v714 = vsel %vm711, %v713, %v709
    %v715 = vmul.f32 1.0, %v714
    %v716 = vtanh.pop %v696
    %v717 = vmul.f32 %v715, %v598
    %719 = vrot.lane.b32.xlu0 %v716, 64
    %v720 = vpop.permute.xlu0 %719
    %v722 = vmul.f32 %v715, %v720
    %724 = vrot.lane.b32.xlu0 %v722, 32
    %v725 = vpop.permute.xlu0 %724
    %v727 = vadd.f32 %v717, %v725
    %v728 = vtanh.pop %v727
    %730 = vrot.lane.b32.xlu0 %v728, 64
    %v731 = vpop.permute.xlu0 %730
    %v733 = vmul.f32 %v715, %v731
    %v734 = vpack.c.bf16 %v733, %v733
    %v735 = vadd.f32 %v606, %v733
    %736 = vmatpush.bf16.msra.mxu0 0
    %737 = vmatpush.bf16.msra.mxu0 0
    %738 = vmatpush.bf16.msra.mxu0 0
    %739 = vmatpush.bf16.msra.mxu0 0
    %740 = vmatpush.bf16.msra.mxu0 0
    %741 = vmatpush.bf16.msra.mxu0 0
    %742 = vmatpush.bf16.msra.mxu0 %v182
    %743 = vmatpush.bf16.msra.mxu0 %v181
    %744 = vmatmul.bf16.gmra.mxu0 %v681
    %v745 = vpop.f32.mrf.mxu0
    %v746 = vadd.f32 %v140, %v745
    %v747 = vpop.f32.mrf.mxu0
    %748 = vdwg.mxu0
    %v749 = vxor.u32 %v746, 2147483648
    %v750 = vmul.f32 %v749, 1.442695
    %v751 = vpow.pop %v750
    %v752 = vadd.f32 %v751, 1.0
    %v753 = vrcp.pop %v752
    %v754 = vmul.f32 %v752, %v753
    %v755 = vsub.f32 1.0, %v754
    %v756 = vmul.f32 %v753, %v755
    %v757 = vadd.f32 %v753, %v756
    %vm758 = vweird.f32 %v752
    %vm759 = vweird.f32 %v753
    %vm760 = vmor %vm758, %vm759
    %v761 = vsel %vm760, %v753, %v757
    %v762 = vand.u32 2147483647, %v752
    %vm763 = vcmp.eq.f32.partialorder %v762, 8.507059e+37
    %v764 = vand.u32 %v752, 2147483648
    %v765 = vor.u32 1.1754944e-38, %v764
    %v766 = vsel %vm763, %v765, %v761
    %v767 = vmul.f32 1.0, %v766
    %v768 = vtanh.pop %v746
    %v769 = vmul.f32 %v767, %v650
    %771 = vrot.lane.b32.xlu0 %v768, 64
    %v772 = vpop.permute.xlu0 %771
    %v774 = vmul.f32 %v767, %v772
    %776 = vrot.lane.b32.xlu0 %v774, 32
    %v777 = vpop.permute.xlu0 %776
    %v779 = vadd.f32 %v769, %v777
    %v780 = vtanh.pop %v779
    %782 = vrot.lane.b32.xlu0 %v780, 64
    %v783 = vpop.permute.xlu0 %782
    %v785 = vmul.f32 %v767, %v783
    %v786 = vpack.c.bf16 %v785, %v785
    %788 = vrot.lane.b32.xlu0 %v734, 32
    %v789 = vpop.permute.xlu0 %788
    %v791 = vsel %vm107, %v789, 0
    %793 = vmatpush.bf16.msra.mxu0 0
    %794 = vmatpush.bf16.msra.mxu0 0
    %795 = vmatpush.bf16.msra.mxu0 0
    %796 = vmatpush.bf16.msra.mxu0 0
    %797 = vmatpush.bf16.msra.mxu0 0
    %798 = vmatpush.bf16.msra.mxu0 0
    %799 = vmatpush.bf16.msra.mxu0 %v252
    %800 = vmatpush.bf16.msra.mxu0 %v251
    %801 = vmatmul.bf16.gmra.mxu0 %v791
    %v802 = vpop.f32.mrf.mxu0
    %v803 = vadd.f32 0.0, %v802
    %v804 = vpop.f32.mrf.mxu0
    %805 = vdwg.mxu0
    %807 = vrot.lane.b32.xlu0 %v786, 32
    %v808 = vpop.permute.xlu0 %807
    %v810 = vsel %vm107, %v808, 0
    %812 = vmatpush.bf16.msra.mxu0 0
    %813 = vmatpush.bf16.msra.mxu0 0
    %814 = vmatpush.bf16.msra.mxu0 0
    %815 = vmatpush.bf16.msra.mxu0 0
    %816 = vmatpush.bf16.msra.mxu0 0
    %817 = vmatpush.bf16.msra.mxu0 0
    %818 = vmatpush.bf16.msra.mxu0 %v283
    %819 = vmatpush.bf16.msra.mxu0 %v282
    %820 = vmatmul.bf16.gmra.mxu0 %v810
    %v821 = vpop.f32.mrf.mxu0
    %v822 = vadd.f32 %v803, %v821
    %v823 = vpop.f32.mrf.mxu0
    %824 = vdwg.mxu0
    %v825 = vadd.f32 %v822, %v303
    %v826 = vxor.u32 %v825, 2147483648
    %v827 = vmul.f32 %v826, 1.442695
    %v828 = vpow.pop %v827
    %v829 = vadd.f32 %v828, 1.0
    %v830 = vrcp.pop %v829
    %v831 = vmul.f32 %v829, %v830
    %v832 = vsub.f32 1.0, %v831
    %v833 = vmul.f32 %v830, %v832
    %v834 = vadd.f32 %v830, %v833
    %vm835 = vweird.f32 %v829
    %vm836 = vweird.f32 %v830
    %vm837 = vmor %vm835, %vm836
    %v838 = vsel %vm837, %v830, %v834
    %v839 = vand.u32 2147483647, %v829
    %vm840 = vcmp.eq.f32.partialorder %v839, 8.507059e+37
    %v841 = vand.u32 %v829, 2147483648
    %v842 = vor.u32 1.1754944e-38, %v841
    %v843 = vsel %vm840, %v842, %v838
    %v844 = vmul.f32 1.0, %v843
    %v845 = vtanh.pop %v825
    %v846 = vmul.f32 %v844, %v727
    %848 = vrot.lane.b32.xlu0 %v845, 64
    %v849 = vpop.permute.xlu0 %848
    %v851 = vmul.f32 %v844, %v849
    %853 = vrot.lane.b32.xlu0 %v851, 32
    %v854 = vpop.permute.xlu0 %853
    %v856 = vadd.f32 %v846, %v854
    %v857 = vtanh.pop %v856
    %859 = vrot.lane.b32.xlu0 %v857, 64
    %v860 = vpop.permute.xlu0 %859
    %v862 = vmul.f32 %v844, %v860
    %v863 = vpack.c.bf16 %v862, %v862
    %v864 = vadd.f32 %v735, %v862
    %865 = vmatpush.bf16.msra.mxu0 0
    %866 = vmatpush.bf16.msra.mxu0 0
    %867 = vmatpush.bf16.msra.mxu0 0
    %868 = vmatpush.bf16.msra.mxu0 0
    %869 = vmatpush.bf16.msra.mxu0 0
    %870 = vmatpush.bf16.msra.mxu0 0
    %871 = vmatpush.bf16.msra.mxu0 %v182
    %872 = vmatpush.bf16.msra.mxu0 %v181
    %873 = vmatmul.bf16.gmra.mxu0 %v810
    %v874 = vpop.f32.mrf.mxu0
    %v875 = vadd.f32 %v142, %v874
    %v876 = vpop.f32.mrf.mxu0
    %877 = vdwg.mxu0
    %v878 = vxor.u32 %v875, 2147483648
    %v879 = vmul.f32 %v878, 1.442695
    %v880 = vpow.pop %v879
    %v881 = vadd.f32 %v880, 1.0
    %v882 = vrcp.pop %v881
    %v883 = vmul.f32 %v881, %v882
    %v884 = vsub.f32 1.0, %v883
    %v885 = vmul.f32 %v882, %v884
    %v886 = vadd.f32 %v882, %v885
    %vm887 = vweird.f32 %v881
    %vm888 = vweird.f32 %v882
    %vm889 = vmor %vm887, %vm888
    %v890 = vsel %vm889, %v882, %v886
    %v891 = vand.u32 2147483647, %v881
    %vm892 = vcmp.eq.f32.partialorder %v891, 8.507059e+37
    %v893 = vand.u32 %v881, 2147483648
    %v894 = vor.u32 1.1754944e-38, %v893
    %v895 = vsel %vm892, %v894, %v890
    %v896 = vmul.f32 1.0, %v895
    %v897 = vtanh.pop %v875
    %v898 = vmul.f32 %v896, %v779
    %900 = vrot.lane.b32.xlu0 %v897, 64
    %v901 = vpop.permute.xlu0 %900
    %v903 = vmul.f32 %v896, %v901
    %905 = vrot.lane.b32.xlu0 %v903, 32
    %v906 = vpop.permute.xlu0 %905
    %v908 = vadd.f32 %v898, %v906
    %v909 = vtanh.pop %v908
    %911 = vrot.lane.b32.xlu0 %v909, 64
    %v912 = vpop.permute.xlu0 %911
    %v914 = vmul.f32 %v896, %v912
    %v915 = vpack.c.bf16 %v914, %v914
    %917 = vrot.lane.b32.xlu0 %v863, 32
    %v918 = vpop.permute.xlu0 %917
    %v920 = vsel %vm107, %v918, 0
    %922 = vmatpush.bf16.msra.mxu0 0
    %923 = vmatpush.bf16.msra.mxu0 0
    %924 = vmatpush.bf16.msra.mxu0 0
    %925 = vmatpush.bf16.msra.mxu0 0
    %926 = vmatpush.bf16.msra.mxu0 0
    %927 = vmatpush.bf16.msra.mxu0 0
    %928 = vmatpush.bf16.msra.mxu0 %v252
    %929 = vmatpush.bf16.msra.mxu0 %v251
    %930 = vmatmul.bf16.gmra.mxu0 %v920
    %v931 = vpop.f32.mrf.mxu0
    %v932 = vadd.f32 0.0, %v931
    %v933 = vpop.f32.mrf.mxu0
    %934 = vdwg.mxu0
    %936 = vrot.lane.b32.xlu0 %v915, 32
    %v937 = vpop.permute.xlu0 %936
    %v939 = vsel %vm107, %v937, 0
    %941 = vmatpush.bf16.msra.mxu0 0
    %942 = vmatpush.bf16.msra.mxu0 0
    %943 = vmatpush.bf16.msra.mxu0 0
    %944 = vmatpush.bf16.msra.mxu0 0
    %945 = vmatpush.bf16.msra.mxu0 0
    %946 = vmatpush.bf16.msra.mxu0 0
    %947 = vmatpush.bf16.msra.mxu0 %v283
    %948 = vmatpush.bf16.msra.mxu0 %v282
    %949 = vmatmul.bf16.gmra.mxu0 %v939
    %v950 = vpop.f32.mrf.mxu0
    %v951 = vadd.f32 %v932, %v950
    %v952 = vpop.f32.mrf.mxu0
    %953 = vdwg.mxu0
    %v954 = vadd.f32 %v951, %v303
    %v955 = vxor.u32 %v954, 2147483648
    %v956 = vmul.f32 %v955, 1.442695
    %v957 = vpow.pop %v956
    %v958 = vadd.f32 %v957, 1.0
    %v959 = vrcp.pop %v958
    %v960 = vmul.f32 %v958, %v959
    %v961 = vsub.f32 1.0, %v960
    %v962 = vmul.f32 %v959, %v961
    %v963 = vadd.f32 %v959, %v962
    %vm964 = vweird.f32 %v958
    %vm965 = vweird.f32 %v959
    %vm966 = vmor %vm964, %vm965
    %v967 = vsel %vm966, %v959, %v963
    %v968 = vand.u32 2147483647, %v958
    %vm969 = vcmp.eq.f32.partialorder %v968, 8.507059e+37
    %v970 = vand.u32 %v958, 2147483648
    %v971 = vor.u32 1.1754944e-38, %v970
    %v972 = vsel %vm969, %v971, %v967
    %v973 = vmul.f32 1.0, %v972
    %v974 = vtanh.pop %v954
    %v975 = vmul.f32 %v973, %v856
    %977 = vrot.lane.b32.xlu0 %v974, 64
    %v978 = vpop.permute.xlu0 %977
    %v980 = vmul.f32 %v973, %v978
    %982 = vrot.lane.b32.xlu0 %v980, 32
    %v983 = vpop.permute.xlu0 %982
    %v985 = vadd.f32 %v975, %v983
    %v986 = vtanh.pop %v985
    %988 = vrot.lane.b32.xlu0 %v986, 64
    %v989 = vpop.permute.xlu0 %988
    %v991 = vmul.f32 %v973, %v989
    %v992 = vpack.c.bf16 %v991, %v991
    %v993 = vadd.f32 %v864, %v991
    %994 = vmatpush.bf16.msra.mxu0 0
    %995 = vmatpush.bf16.msra.mxu0 0
    %996 = vmatpush.bf16.msra.mxu0 0
    %997 = vmatpush.bf16.msra.mxu0 0
    %998 = vmatpush.bf16.msra.mxu0 0
    %999 = vmatpush.bf16.msra.mxu0 0
    %1000 = vmatpush.bf16.msra.mxu0 %v182
    %1001 = vmatpush.bf16.msra.mxu0 %v181
    %1002 = vmatmul.bf16.gmra.mxu0 %v939
    %v1003 = vpop.f32.mrf.mxu0
    %v1004 = vadd.f32 %v145, %v1003
    %v1005 = vpop.f32.mrf.mxu0
    %1006 = vdwg.mxu0
    %v1007 = vxor.u32 %v1004, 2147483648
    %v1008 = vmul.f32 %v1007, 1.442695
    %v1009 = vpow.pop %v1008
    %v1010 = vadd.f32 %v1009, 1.0
    %v1011 = vrcp.pop %v1010
    %v1012 = vmul.f32 %v1010, %v1011
    %v1013 = vsub.f32 1.0, %v1012
    %v1014 = vmul.f32 %v1011, %v1013
    %v1015 = vadd.f32 %v1011, %v1014
    %vm1016 = vweird.f32 %v1010
    %vm1017 = vweird.f32 %v1011
    %vm1018 = vmor %vm1016, %vm1017
    %v1019 = vsel %vm1018, %v1011, %v1015
    %v1020 = vand.u32 2147483647, %v1010
    %vm1021 = vcmp.eq.f32.partialorder %v1020, 8.507059e+37
    %v1022 = vand.u32 %v1010, 2147483648
    %v1023 = vor.u32 1.1754944e-38, %v1022
    %v1024 = vsel %vm1021, %v1023, %v1019
    %v1025 = vmul.f32 1.0, %v1024
    %v1026 = vtanh.pop %v1004
    %v1027 = vmul.f32 %v1025, %v908
    %1029 = vrot.lane.b32.xlu0 %v1026, 64
    %v1030 = vpop.permute.xlu0 %1029
    %v1032 = vmul.f32 %v1025, %v1030
    %1034 = vrot.lane.b32.xlu0 %v1032, 32
    %v1035 = vpop.permute.xlu0 %1034
    %v1037 = vadd.f32 %v1027, %v1035
    %v1038 = vtanh.pop %v1037
    %1040 = vrot.lane.b32.xlu0 %v1038, 64
    %v1041 = vpop.permute.xlu0 %1040
    %v1043 = vmul.f32 %v1025, %v1041
    %v1044 = vpack.c.bf16 %v1043, %v1043
    %1046 = vrot.lane.b32.xlu0 %v992, 32
    %v1047 = vpop.permute.xlu0 %1046
    %v1049 = vsel %vm107, %v1047, 0
    %1051 = vmatpush.bf16.msra.mxu0 0
    %1052 = vmatpush.bf16.msra.mxu0 0
    %1053 = vmatpush.bf16.msra.mxu0 0
    %1054 = vmatpush.bf16.msra.mxu0 0
    %1055 = vmatpush.bf16.msra.mxu0 0
    %1056 = vmatpush.bf16.msra.mxu0 0
    %1057 = vmatpush.bf16.msra.mxu0 %v252
    %1058 = vmatpush.bf16.msra.mxu0 %v251
    %1059 = vmatmul.bf16.gmra.mxu0 %v1049
    %v1060 = vpop.f32.mrf.mxu0
    %v1061 = vadd.f32 0.0, %v1060
    %v1062 = vpop.f32.mrf.mxu0
    %1063 = vdwg.mxu0
    %1065 = vrot.lane.b32.xlu0 %v1044, 32
    %v1066 = vpop.permute.xlu0 %1065
    %v1068 = vsel %vm107, %v1066, 0
    %1070 = vmatpush.bf16.msra.mxu0 0
    %1071 = vmatpush.bf16.msra.mxu0 0
    %1072 = vmatpush.bf16.msra.mxu0 0
    %1073 = vmatpush.bf16.msra.mxu0 0
    %1074 = vmatpush.bf16.msra.mxu0 0
    %1075 = vmatpush.bf16.msra.mxu0 0
    %1076 = vmatpush.bf16.msra.mxu0 %v283
    %1077 = vmatpush.bf16.msra.mxu0 %v282
    %1078 = vmatmul.bf16.gmra.mxu0 %v1068
    %v1079 = vpop.f32.mrf.mxu0
    %v1080 = vadd.f32 %v1061, %v1079
    %v1081 = vpop.f32.mrf.mxu0
    %1082 = vdwg.mxu0
    %v1083 = vadd.f32 %v1080, %v303
    %v1084 = vxor.u32 %v1083, 2147483648
    %v1085 = vmul.f32 %v1084, 1.442695
    %v1086 = vpow.pop %v1085
    %v1087 = vadd.f32 %v1086, 1.0
    %v1088 = vrcp.pop %v1087
    %v1089 = vmul.f32 %v1087, %v1088
    %v1090 = vsub.f32 1.0, %v1089
    %v1091 = vmul.f32 %v1088, %v1090
    %v1092 = vadd.f32 %v1088, %v1091
    %vm1093 = vweird.f32 %v1087
    %vm1094 = vweird.f32 %v1088
    %vm1095 = vmor %vm1093, %vm1094
    %v1096 = vsel %vm1095, %v1088, %v1092
    %v1097 = vand.u32 2147483647, %v1087
    %vm1098 = vcmp.eq.f32.partialorder %v1097, 8.507059e+37
    %v1099 = vand.u32 %v1087, 2147483648
    %v1100 = vor.u32 1.1754944e-38, %v1099
    %v1101 = vsel %vm1098, %v1100, %v1096
    %v1102 = vmul.f32 1.0, %v1101
    %v1103 = vtanh.pop %v1083
    %v1104 = vmul.f32 %v1102, %v985
    %1106 = vrot.lane.b32.xlu0 %v1103, 64
    %v1107 = vpop.permute.xlu0 %1106
    %v1109 = vmul.f32 %v1102, %v1107
    %1111 = vrot.lane.b32.xlu0 %v1109, 32
    %v1112 = vpop.permute.xlu0 %1111
    %v1114 = vadd.f32 %v1104, %v1112
    %v1115 = vtanh.pop %v1114
    %1117 = vrot.lane.b32.xlu0 %v1115, 64
    %v1118 = vpop.permute.xlu0 %1117
    %v1120 = vmul.f32 %v1102, %v1118
    %v1121 = vpack.c.bf16 %v1120, %v1120
    %v1122 = vadd.f32 %v993, %v1120
    %1123 = vmatpush.bf16.msra.mxu0 0
    %1124 = vmatpush.bf16.msra.mxu0 0
    %1125 = vmatpush.bf16.msra.mxu0 0
    %1126 = vmatpush.bf16.msra.mxu0 0
    %1127 = vmatpush.bf16.msra.mxu0 0
    %1128 = vmatpush.bf16.msra.mxu0 0
    %1129 = vmatpush.bf16.msra.mxu0 %v182
    %1130 = vmatpush.bf16.msra.mxu0 %v181
    %1131 = vmatmul.bf16.gmra.mxu0 %v1068
    %v1132 = vpop.f32.mrf.mxu0
    %v1133 = vadd.f32 %v147, %v1132
    %v1134 = vpop.f32.mrf.mxu0
    %1135 = vdwg.mxu0
    %v1136 = vxor.u32 %v1133, 2147483648
    %v1137 = vmul.f32 %v1136, 1.442695
    %v1138 = vpow.pop %v1137
    %v1139 = vadd.f32 %v1138, 1.0
    %v1140 = vrcp.pop %v1139
    %v1141 = vmul.f32 %v1139, %v1140
    %v1142 = vsub.f32 1.0, %v1141
    %v1143 = vmul.f32 %v1140, %v1142
    %v1144 = vadd.f32 %v1140, %v1143
    %vm1145 = vweird.f32 %v1139
    %vm1146 = vweird.f32 %v1140
    %vm1147 = vmor %vm1145, %vm1146
    %v1148 = vsel %vm1147, %v1140, %v1144
    %v1149 = vand.u32 2147483647, %v1139
    %vm1150 = vcmp.eq.f32.partialorder %v1149, 8.507059e+37
    %v1151 = vand.u32 %v1139, 2147483648
    %v1152 = vor.u32 1.1754944e-38, %v1151
    %v1153 = vsel %vm1150, %v1152, %v1148
    %v1154 = vmul.f32 1.0, %v1153
    %v1155 = vtanh.pop %v1133
    %v1156 = vmul.f32 %v1154, %v1037
    %1158 = vrot.lane.b32.xlu0 %v1155, 64
    %v1159 = vpop.permute.xlu0 %1158
    %v1161 = vmul.f32 %v1154, %v1159
    %1163 = vrot.lane.b32.xlu0 %v1161, 32
    %v1164 = vpop.permute.xlu0 %1163
    %v1166 = vadd.f32 %v1156, %v1164
    %v1167 = vtanh.pop %v1166
    %1169 = vrot.lane.b32.xlu0 %v1167, 64
    %v1170 = vpop.permute.xlu0 %1169
    %v1172 = vmul.f32 %v1154, %v1170
    %v1173 = vpack.c.bf16 %v1172, %v1172
    %1175 = vrot.lane.b32.xlu0 %v1121, 32
    %v1176 = vpop.permute.xlu0 %1175
    %v1178 = vsel %vm107, %v1176, 0
    %1180 = vmatpush.bf16.msra.mxu0 0
    %1181 = vmatpush.bf16.msra.mxu0 0
    %1182 = vmatpush.bf16.msra.mxu0 0
    %1183 = vmatpush.bf16.msra.mxu0 0
    %1184 = vmatpush.bf16.msra.mxu0 0
    %1185 = vmatpush.bf16.msra.mxu0 0
    %1186 = vmatpush.bf16.msra.mxu0 %v252
    %1187 = vmatpush.bf16.msra.mxu0 %v251
    %1188 = vmatmul.bf16.gmra.mxu0 %v1178
    %v1189 = vpop.f32.mrf.mxu0
    %v1190 = vadd.f32 0.0, %v1189
    %v1191 = vpop.f32.mrf.mxu0
    %1192 = vdwg.mxu0
    %1194 = vrot.lane.b32.xlu0 %v1173, 32
    %v1195 = vpop.permute.xlu0 %1194
    %v1197 = vsel %vm107, %v1195, 0
    %1199 = vmatpush.bf16.msra.mxu0 0
    %1200 = vmatpush.bf16.msra.mxu0 0
    %1201 = vmatpush.bf16.msra.mxu0 0
    %1202 = vmatpush.bf16.msra.mxu0 0
    %1203 = vmatpush.bf16.msra.mxu0 0
    %1204 = vmatpush.bf16.msra.mxu0 0
    %1205 = vmatpush.bf16.msra.mxu0 %v283
    %1206 = vmatpush.bf16.msra.mxu0 %v282
    %1207 = vmatmul.bf16.gmra.mxu0 %v1197
    %v1208 = vpop.f32.mrf.mxu0
    %v1209 = vadd.f32 %v1190, %v1208
    %v1210 = vpop.f32.mrf.mxu0
    %1211 = vdwg.mxu0
    %v1212 = vadd.f32 %v1209, %v303
    %v1213 = vxor.u32 %v1212, 2147483648
    %v1214 = vmul.f32 %v1213, 1.442695
    %v1215 = vpow.pop %v1214
    %v1216 = vadd.f32 %v1215, 1.0
    %v1217 = vrcp.pop %v1216
    %v1218 = vmul.f32 %v1216, %v1217
    %v1219 = vsub.f32 1.0, %v1218
    %v1220 = vmul.f32 %v1217, %v1219
    %v1221 = vadd.f32 %v1217, %v1220
    %vm1222 = vweird.f32 %v1216
    %vm1223 = vweird.f32 %v1217
    %vm1224 = vmor %vm1222, %vm1223
    %v1225 = vsel %vm1224, %v1217, %v1221
    %v1226 = vand.u32 2147483647, %v1216
    %vm1227 = vcmp.eq.f32.partialorder %v1226, 8.507059e+37
    %v1228 = vand.u32 %v1216, 2147483648
    %v1229 = vor.u32 1.1754944e-38, %v1228
    %v1230 = vsel %vm1227, %v1229, %v1225
    %v1231 = vmul.f32 1.0, %v1230
    %v1232 = vtanh.pop %v1212
    %v1233 = vmul.f32 %v1231, %v1114
    %1235 = vrot.lane.b32.xlu0 %v1232, 64
    %v1236 = vpop.permute.xlu0 %1235
    %v1238 = vmul.f32 %v1231, %v1236
    %1240 = vrot.lane.b32.xlu0 %v1238, 32
    %v1241 = vpop.permute.xlu0 %1240
    %v1243 = vadd.f32 %v1233, %v1241
    %v1244 = vtanh.pop %v1243
    %1246 = vrot.lane.b32.xlu0 %v1244, 64
    %v1247 = vpop.permute.xlu0 %1246
    %v1249 = vmul.f32 %v1231, %v1247
    %v1250 = vadd.f32 %v1122, %v1249
    %v1251 = vmul.f32 %v1250, 0.125
    %v1253 = vperm.slane %v166, 0
    %1256 = vrot.lane.b32.xlu0 %v1251, 32
    %v1257 = vpop.permute.xlu0 %1256
    %v1258 = vsel %vm107, %v1257, 0
    %1260 = vmatpush.msra.mxu0 0.0
    %1261 = vmatpush.msra.mxu0 0.0
    %1262 = vmatpush.msra.mxu0 0.0
    %1263 = vmatpush.msra.mxu0 0.0
    %1264 = vmatpush.msra.mxu0 0.0
    %1265 = vmatpush.msra.mxu0 0.0
    %1266 = vmatpush.msra.mxu0 0.0
    %1267 = vmatpush.msra.mxu0 0.0
    %1268 = vmatpush.msra.mxu0 0.0
    %1269 = vmatpush.msra.mxu0 0.0
    %1270 = vmatpush.msra.mxu0 0.0
    %1271 = vmatpush.msra.mxu0 0.0
    %1272 = vmatpush.msra.mxu0 %v165
    %1273 = vmatpush.msra.mxu0 %v164
    %1274 = vmatpush.msra.mxu0 %v163
    %1275 = vmatpush.msra.mxu0 %v162
    %1276 = vmatmul.f32.gmra.mxu0 %v1258
    %v1277 = vpop.f32.mrf.mxu0
    %v1278 = vadd.f32 %v1253, %v1277
    %1279 = vdwg.mxu0
    %vm1280 = vcmask 130048
    %1281 = vst.msk [vmem:[#allocation5] sm:$0xff] %vm1280, %v1278
    %1283 = vrot.lane.b32.xlu0 %v1172, 32
    %v1284 = vpop.permute.xlu0 %1283
    %1286 = vst.msk [vmem:[#allocation6] sm:$0xff] %vm107, %v1284
    %1288 = vrot.lane.b32.xlu0 %v1166, 96
    %v1289 = vpop.permute.xlu0 %1288
    %1291 = vst.msk [vmem:[#allocation6 + $0x10] sm:$0xff] %vm107, %v1289
    %1293 = vrot.lane.b32.xlu0 %v1249, 32
    %v1294 = vpop.permute.xlu0 %1293
    %1296 = vst.msk [vmem:[#allocation6 + $0x8] sm:$0xff] %vm107, %v1294
    %1298 = vrot.lane.b32.xlu0 %v1243, 96
    %v1299 = vpop.permute.xlu0 %1298
    %1301 = vst.msk [vmem:[#allocation6 + $0x18] sm:$0xff] %vm107, %v1299
    // Predicated region
    $region50: #{tpu_custom_call.1} parent=1 // pred_check
      _
    $region51: #{tpu_custom_call.1} parent=1 // pred_check_branch
      %1303 = sbr.rel (0) target = $region53
    $region52: #{tpu_custom_call.1} parent=1 // pred_region
      %1305 = vsyncadd [#allocation4], 0
      %s1307 = sshll.u32 [#allocation5], 4
      %s1308 = int_to_ptr.vmem [resolvable:$true] %s1307
      %s1309 = sshll.u32 %s11, 4
      %s1310 = int_to_ptr.hbm [resolvable:$true] %s1309
      %1312 = dma.vmem_to_hbm [thread:$0]  %s1308, 128, %s1310, [#allocation4]
    $region53: #{tpu_custom_call.1} parent=1 // pred_fallthru
      _
    // Predicated region
    $region54: #{tpu_custom_call.1} parent=1 // pred_check
      _
    $region55: #{tpu_custom_call.1} parent=1 // pred_check_branch
      %1314 = sbr.rel (0) target = $region57
    $region56: #{tpu_custom_call.1} parent=1 // pred_region
      %1316 = vsyncadd [#allocation7], 0
      %s1317 = sshll.u32 [#allocation6], 4
      %s1318 = int_to_ptr.vmem [resolvable:$true] %s1317
      %s1319 = sshll.u32 %s12, 4
      %s1320 = int_to_ptr.hbm [resolvable:$true] %s1319
      %1325 = dma.vmem_to_hbm [thread:$0]  %s1318, 512, %s1320, [#allocation7], 128, 128, 8
    $region57: #{tpu_custom_call.1} parent=1 // pred_fallthru
      _
    // Predicated region
    $region58: #{tpu_custom_call.1} parent=1 // pred_check
      _
    $region59: #{tpu_custom_call.1} parent=1 // pred_check_branch
      %1327 = sbr.rel (0) target = $region61
    $region60: #{tpu_custom_call.1} parent=1 // pred_region
      %1329 = dma.done [#allocation4], 128
    $region61: #{tpu_custom_call.1} parent=1 // pred_fallthru
      _
    // Predicated region
    $region62: #{tpu_custom_call.1} parent=1 // pred_check
      _
    $region63: #{tpu_custom_call.1} parent=1 // pred_check_branch
      %1331 = sbr.rel (0) target = $region65
    $region64: #{tpu_custom_call.1} parent=1 // pred_region
      %1333 = dma.done [#allocation7], 512
    $region65: #{tpu_custom_call.1} parent=1 // pred_fallthru
      _
    %1334 = vsyncpa [#allocation3], 1
    %1335 = vsyncpa [#allocation4], 1
    %1336 = vsyncpa [#allocation7], 1

</llo_original>
